<compile_context>
chip_gen: v7x
topology: tpu7x:2x2x1
jax: 0.10.0
libtpu: 0.0.40
codegen_flags: <defaults>
</compile_context>

<pallas_src>
import jax
import jax.numpy as jnp
import numpy as np
from jax.experimental import pallas as pl
from jax.experimental.pallas import tpu as pltpu

# ----------------------------- configuration -------------------------------
B = 2            # batch
IN_CH = 1        # in_channels (module default)
LATENT = 4       # latent_dim
BASE = 32        # base_channels
HID = BASE * 2   # slot-expander hidden_dim
T = 8            # num_frames (small for the demo)
H = W = 16       # resolution


def _ceil_to(x, m):
    return ((x + m - 1) // m) * m


# ---- packed weight-slab row layout (all row starts are multiples of 8) -----
ROW_W2T = 0                       # [T, HID]        attn-logit weights (transposed)
ROW_WE  = ROW_W2T + T             # [T*L, T*C]      kron(I_T, we.T)
ROW_WTP = ROW_WE + T * LATENT     # [T*L, T*L]      kron(wt, wp.T)
ROW_WD1 = ROW_WTP + T * LATENT    # [T*BASE, T*L]   kron(I_T, wd1.T)
ROW_WD2 = ROW_WD1 + T * BASE      # [T*C, T*BASE]   kron(I_T, wd2.T)
ROW_W1  = ROW_WD2 + T * IN_CH     # [HID, 1]        feature-net weight column
ROW_B1  = ROW_W1 + HID            # [HID, 1]
ROW_B2  = ROW_B1 + HID            # [T, 1]
ROW_BE  = ROW_B2 + T              # [T*L, 1]
ROW_BP  = ROW_BE + T * LATENT     # [T*L, 1]
ROW_BD1 = ROW_BP + T * LATENT     # [T*BASE, 1]
ROW_BD2 = ROW_BD1 + T * BASE      # [T*C, 1]
SLAB_ROWS = _ceil_to(ROW_BD2 + T * IN_CH, 8)       # 800
SLAB_COLS = _ceil_to(max(HID, T * BASE), 128)      # 256

# ---- packed output-slab row layout ------------------------------------------
OUT_XR = 0                        # [T*C, N]
OUT_Z1 = OUT_XR + T * IN_CH       # [T*L, N]
OUT_Z2 = OUT_Z1 + T * LATENT      # [T*L, N]
OUT_MASK = OUT_Z2 + T * LATENT    # [T,   N]
OUT_ROWS = _ceil_to(OUT_MASK + T, 8)               # 80


# ------------------------------- the kernel --------------------------------
def afterimage_kernel(x_ref, w_ref, out_ref):
    # x_ref:   [C=1, n_tile]      afterimage pixels, feature-major
    # w_ref:   [SLAB_ROWS, 256]   packed weights/biases (one DMA)
    # out_ref: [OUT_ROWS, n_tile] packed lane-dense outputs (one store stream)
    x = x_ref[...]                                                     # [1, n]

    # --- SlotBasedAfterimageToVideo -----------------------------------------
    # pointwise feature net: C==1 -> pure VPU outer-product broadcast
    w1c = w_ref[ROW_W1:ROW_W1 + HID, 0:1]                              # [HID,1]
    b1c = w_ref[ROW_B1:ROW_B1 + HID, 0:1]
    h = jnp.maximum(w1c * x + b1c, 0.0)                                # [HID, n]

    # per-frame attention logits on the MXU
    w2T = w_ref[ROW_W2T:ROW_W2T + T, 0:HID]                            # [T, HID]
    b2c = w_ref[ROW_B2:ROW_B2 + T, 0:1]
    logits = jnp.dot(w2T, h, preferred_element_type=jnp.float32) + b2c # [T, n]

    # softmax over frames (sublane axis); exact divide for bit-closeness
    m = jnp.max(logits, axis=0, keepdims=True)
    e = jnp.exp(logits - m)
    masks = e / jnp.sum(e, axis=0, keepdims=True)                      # [T, n]

    # slot-expanded video; C == 1 so it is exactly masks * x
    video = masks * x                                                  # [T, n]

    # --- TemporalAwareSpatialEncoder (block-diag pointwise conv) -------------
    weT = w_ref[ROW_WE:ROW_WE + T * LATENT, 0:T * IN_CH]               # [32, 8]
    bec = w_ref[ROW_BE:ROW_BE + T * LATENT, 0:1]
    z1 = jnp.maximum(
        jnp.dot(weT, video, preferred_element_type=jnp.float32) + bec, 0.0)

    # --- TemporalEncoder: frame mixing + projection fused as kron(wt, wp.T) --
    wtpT = w_ref[ROW_WTP:ROW_WTP + T * LATENT, 0:T * LATENT]           # [32, 32]
    bpc = w_ref[ROW_BP:ROW_BP + T * LATENT, 0:1]
    z2 = jnp.tanh(
        jnp.dot(wtpT, z1, preferred_element_type=jnp.float32) + bpc)   # [32, n]

    # --- frozen VideoVAE.decode (block-diag L -> BASE -> C, sigmoid) ---------
    wd1T = w_ref[ROW_WD1:ROW_WD1 + T * BASE, 0:T * LATENT]             # [256, 32]
    bd1c = w_ref[ROW_BD1:ROW_BD1 + T * BASE, 0:1]
    hd = jnp.maximum(
        jnp.dot(wd1T, z2, preferred_element_type=jnp.float32) + bd1c, 0.0)

    wd2T = w_ref[ROW_WD2:ROW_WD2 + T * IN_CH, 0:T * BASE]              # [8, 256]
    bd2c = w_ref[ROW_BD2:ROW_BD2 + T * IN_CH, 0:1]
    xr = jax.nn.sigmoid(
        jnp.dot(wd2T, hd, preferred_element_type=jnp.float32) + bd2c)  # [8, n]

    # single lane-dense output slab (last dim = n_tile >= 256 -> unmasked vst)
    out_ref[OUT_XR:OUT_XR + T * IN_CH, :] = xr
    out_ref[OUT_Z1:OUT_Z1 + T * LATENT, :] = z1
    out_ref[OUT_Z2:OUT_Z2 + T * LATENT, :] = z2
    out_ref[OUT_MASK:OUT_MASK + T, :] = masks


# ------------------------------ the wrapper ---------------------------------
def make_params(key):
    ks = jax.random.split(key, 13)
    s = 0.2
    return dict(
        w1=s * jax.random.normal(ks[0], (IN_CH, HID), jnp.float32),
        b1=s * jax.random.normal(ks[1], (1, HID), jnp.float32),
        w2=s * jax.random.normal(ks[2], (HID, T), jnp.float32),
        b2=s * jax.random.normal(ks[3], (1, T), jnp.float32),
        we=s * jax.random.normal(ks[4], (IN_CH, LATENT), jnp.float32),
        be=s * jax.random.normal(ks[5], (1, LATENT), jnp.float32),
        wt=s * jax.random.normal(ks[6], (T, T), jnp.float32)
            + jnp.eye(T, dtype=jnp.float32),
        wp=s * jax.random.normal(ks[7], (LATENT, LATENT), jnp.float32),
        bp=s * jax.random.normal(ks[8], (1, LATENT), jnp.float32),
        wd1=s * jax.random.normal(ks[9], (LATENT, BASE), jnp.float32),
        bd1=s * jax.random.normal(ks[10], (1, BASE), jnp.float32),
        wd2=s * jax.random.normal(ks[11], (BASE, IN_CH), jnp.float32),
        bd2=s * jax.random.normal(ks[12], (1, IN_CH), jnp.float32),
    )


def pack_weights(p):
    """Pack every (transposed / block-diag fused) weight into one f32 slab."""
    slab = jnp.zeros((SLAB_ROWS, SLAB_COLS), jnp.float32)
    eye_t = jnp.eye(T, dtype=jnp.float32)

    def put(s, r0, a):
        return s.at[r0:r0 + a.shape[0], 0:a.shape[1]].set(a)

    slab = put(slab, ROW_W2T, p["w2"].T)                       # [T, HID]
    slab = put(slab, ROW_WE, jnp.kron(eye_t, p["we"].T))       # [T*L, T*C]
    slab = put(slab, ROW_WTP, jnp.kron(p["wt"], p["wp"].T))    # [T*L, T*L]
    slab = put(slab, ROW_WD1, jnp.kron(eye_t, p["wd1"].T))     # [T*BASE, T*L]
    slab = put(slab, ROW_WD2, jnp.kron(eye_t, p["wd2"].T))     # [T*C, T*BASE]
    slab = put(slab, ROW_W1, p["w1"].T)                        # [HID, 1]
    slab = put(slab, ROW_B1, p["b1"].T)                        # [HID, 1]
    slab = put(slab, ROW_B2, p["b2"].T)                        # [T, 1]
    slab = put(slab, ROW_BE, jnp.tile(p["be"].T, (T, 1)))      # [T*L, 1]
    slab = put(slab, ROW_BP, jnp.tile(p["bp"].T, (T, 1)))      # [T*L, 1]
    slab = put(slab, ROW_BD1, jnp.tile(p["bd1"].T, (T, 1)))    # [T*BASE, 1]
    slab = put(slab, ROW_BD2, jnp.tile(p["bd2"].T, (T, 1)))    # [T*C, 1]
    return slab


def _pick_tile_n(n):
    """One big tile on single-TC v5e/v6e; grid multiple of 2 on dual-TC v7x."""
    try:
        kind = jax.devices()[0].device_kind.lower()
    except Exception:
        kind = ""
    num_tc = 2 if "v7" in kind else 1
    tile = n // num_tc if num_tc > 1 else n
    if num_tc > 1 and (n % num_tc != 0 or tile % 128 != 0):
        tile = n
    return tile


@jax.jit
def afterimage_forward(x_nchw, params):
    """x_nchw: [B, C, H, W] -> (x_recon, z1, z2, video, attention_masks)."""
    b, c, h, w = x_nchw.shape
    n = b * h * w
    # TODO(synk): kernel is specialized to in_channels == 1 (module default).
    assert c == IN_CH == 1, "kernel specialized for in_channels == 1"
    tile_n = _pick_tile_n(n)
    assert n % tile_n == 0 and (tile_n % 128 == 0 or tile_n == n)

    # NCHW -> feature-major [C, N]: pixel axis sits on the 128-lane dimension.
    x_fm = jnp.transpose(x_nchw, (1, 0, 2, 3)).reshape(c, n).astype(jnp.float32)
    slab = pack_weights(params)   # one weight DMA instead of 13

    out = pl.pallas_call(
        afterimage_kernel,
        out_shape=jax.ShapeDtypeStruct((OUT_ROWS, n), jnp.float32),
        grid=(n // tile_n,),
        in_specs=[
            pl.BlockSpec((c, tile_n), lambda i: (0, i)),
            pl.BlockSpec((SLAB_ROWS, SLAB_COLS), lambda i: (0, 0)),
        ],
        out_specs=pl.BlockSpec((OUT_ROWS, tile_n), lambda i: (0, i)),
        compiler_params=pltpu.CompilerParams(
            dimension_semantics=("parallel",)),
    )(x_fm, slab)

    # feature-major packed slab -> PyTorch NCTHW conventions
    def fm_to_ncthw(fm, ch):
        return jnp.transpose(fm.reshape(T, ch, b, h, w), (2, 1, 0, 3, 4))

    x_recon = fm_to_ncthw(out[OUT_XR:OUT_XR + T * c], c)          # [B,C,T,H,W]
    z1_after = fm_to_ncthw(out[OUT_Z1:OUT_Z1 + T * LATENT], LATENT)
    z2_after = fm_to_ncthw(out[OUT_Z2:OUT_Z2 + T * LATENT], LATENT)
    attention_masks = jnp.transpose(
        out[OUT_MASK:OUT_MASK + T].reshape(T, b, h, w), (1, 0, 2, 3))[:, None]
    # video_from_afterimage is exactly masks * x; rebuilt here for free rather
    # than spending a fifth store stream inside the kernel.
    video = attention_masks * x_nchw[:, :, None, :, :].astype(jnp.float32)
    return x_recon, z1_after, z2_after, video, attention_masks


# --------------------------- pure-JAX reference ------------------------------
def reference_forward(x_nchw, p):
    b, c, h, w = x_nchw.shape
    x = jnp.transpose(x_nchw, (0, 2, 3, 1)).reshape(b * h * w, c)
    hid = jax.nn.relu(x @ p["w1"] + p["b1"])
    logits = hid @ p["w2"] + p["b2"]
    masks = jax.nn.softmax(logits, axis=-1)
    video = masks[:, :, None] * x[:, None, :]
    z1 = jax.nn.relu(jnp.einsum("ntc,cl->ntl", video, p["we"]) + p["be"])
    mixed = jnp.einsum("ts,nsl->ntl", p["wt"], z1)
    z2 = jnp.tanh(jnp.einsum("ntl,lm->ntm", mixed, p["wp"]) + p["bp"])
    hd = jax.nn.relu(jnp.einsum("ntl,lk->ntk", z2, p["wd1"]) + p["bd1"])
    xr = jax.nn.sigmoid(jnp.einsum("ntk,kc->ntc", hd, p["wd2"]) + p["bd2"])

    def to_ncthw(a, ch):
        return jnp.transpose(a.reshape(b, h, w, T, ch), (0, 4, 3, 1, 2))

    return (to_ncthw(xr, c), to_ncthw(z1, LATENT), to_ncthw(z2, LATENT),
            to_ncthw(video, c),
            jnp.transpose(masks.reshape(b, h, w, T), (0, 3, 1, 2))[:, None])


# ----------------------------------- main -----------------------------------
if __name__ == "__main__":
    key = jax.random.PRNGKey(0)
    kx, kp = jax.random.split(key)
    x = jax.random.normal(kx, (B, IN_CH, H, W), jnp.float32)
    params = make_params(kp)

    outs = afterimage_forward(x, params)
    outs = jax.block_until_ready(outs)

    refs = reference_forward(x, params)
    names = ["x_recon", "z1_after", "z2_after", "video", "attention_masks"]
    exp_shapes = [(B, IN_CH, T, H, W), (B, LATENT, T, H, W),
                  (B, LATENT, T, H, W), (B, IN_CH, T, H, W),
                  (B, 1, T, H, W)]
    for name, o, r, es in zip(names, outs, refs, exp_shapes):
        assert o.shape == es, (name, o.shape, es)
        np.testing.assert_allclose(np.asarray(o), np.asarray(r),
                                   rtol=2e-3, atol=2e-3, err_msg=name)

    print("KERNEL_OK")
</pallas_src>

<mosaic_0001>
module attributes {stable_mosaic.version = 11 : i64} {
  func.func @afterimage_kernel(%arg0: i32, %arg1: memref<1x512xf32, #tpu.memory_space<vmem>>, %arg2: memref<800x256xf32, #tpu.memory_space<vmem>>, %arg3: memref<80x512xf32, #tpu.memory_space<vmem>>) attributes {dimension_semantics = [#tpu.dimension_semantics<parallel>], iteration_bounds = array<i64: 1>, scalar_prefetch = 0 : i64, scratch_operands = 0 : i64, tpu.core_type = #tpu.core_type<tc>, window_params = [{transform_indices = @transform_0, window_bounds = array<i64: 1, 512>}, {pipeline_mode = #tpu.pipeline_mode<synchronous>, transform_indices = @transform_1, window_bounds = array<i64: 800, 256>}, {transform_indices = @transform_2, window_bounds = array<i64: 80, 512>}]} {
    %c0 = arith.constant 0 : index
    %c0_0 = arith.constant 0 : index
    %0 = vector.load %arg1[%c0, %c0_0] : memref<1x512xf32, #tpu.memory_space<vmem>>, vector<1x512xf32>
    %c336 = arith.constant 336 : index
    %c0_1 = arith.constant 0 : index
    %1 = vector.load %arg2[%c336, %c0_1] : memref<800x256xf32, #tpu.memory_space<vmem>>, vector<64x1xf32>
    %c400 = arith.constant 400 : index
    %c0_2 = arith.constant 0 : index
    %2 = vector.load %arg2[%c400, %c0_2] : memref<800x256xf32, #tpu.memory_space<vmem>>, vector<64x1xf32>
    %3 = vector.broadcast %1 : vector<64x1xf32> to vector<64x512xf32>
    %4 = vector.broadcast %0 : vector<1x512xf32> to vector<64x512xf32>
    %5 = arith.mulf %3, %4 : vector<64x512xf32>
    %6 = vector.broadcast %2 : vector<64x1xf32> to vector<64x512xf32>
    %7 = arith.addf %5, %6 : vector<64x512xf32>
    %cst = arith.constant 0.000000e+00 : f32
    %8 = vector.broadcast %cst : f32 to vector<64x512xf32>
    %9 = arith.maximumf %7, %8 : vector<64x512xf32>
    %c0_3 = arith.constant 0 : index
    %c0_4 = arith.constant 0 : index
    %10 = vector.load %arg2[%c0_3, %c0_4] : memref<800x256xf32, #tpu.memory_space<vmem>>, vector<8x64xf32>
    %c464 = arith.constant 464 : index
    %c0_5 = arith.constant 0 : index
    %11 = vector.load %arg2[%c464, %c0_5] : memref<800x256xf32, #tpu.memory_space<vmem>>, vector<8x1xf32>
    %cst_6 = arith.constant dense<0.000000e+00> : vector<8x512xf32>
    %12 = tpu.matmul %10, %9, %cst_6 {dimension_numbers = #tpu.dot_dimension_numbers<[1], [0], [0], [1], [0, 0, 1, 1], [], []>} : vector<8x64xf32>, vector<64x512xf32>, vector<8x512xf32> -> vector<8x512xf32>
    %13 = vector.broadcast %11 : vector<8x1xf32> to vector<8x512xf32>
    %14 = arith.addf %12, %13 : vector<8x512xf32>
    %cst_7 = arith.constant dense<0xFF800000> : vector<512xf32>
    %15 = vector.multi_reduction <maximumf>, %14, %cst_7 [0] : vector<8x512xf32> to vector<512xf32>
    %16 = vector.shape_cast %15 : vector<512xf32> to vector<1x512xf32>
    %17 = vector.broadcast %16 : vector<1x512xf32> to vector<8x512xf32>
    %18 = arith.subf %14, %17 : vector<8x512xf32>
    %19 = math.exp %18 : vector<8x512xf32>
    %cst_8 = arith.constant dense<0.000000e+00> : vector<512xf32>
    %20 = vector.multi_reduction <add>, %19, %cst_8 [0] : vector<8x512xf32> to vector<512xf32>
    %21 = vector.shape_cast %20 : vector<512xf32> to vector<1x512xf32>
    %22 = vector.broadcast %21 : vector<1x512xf32> to vector<8x512xf32>
    %23 = arith.divf %19, %22 : vector<8x512xf32>
    %24 = vector.broadcast %0 : vector<1x512xf32> to vector<8x512xf32>
    %25 = arith.mulf %23, %24 : vector<8x512xf32>
    %c8 = arith.constant 8 : index
    %c0_9 = arith.constant 0 : index
    %26 = vector.load %arg2[%c8, %c0_9] : memref<800x256xf32, #tpu.memory_space<vmem>>, vector<32x8xf32>
    %c472 = arith.constant 472 : index
    %c0_10 = arith.constant 0 : index
    %27 = vector.load %arg2[%c472, %c0_10] : memref<800x256xf32, #tpu.memory_space<vmem>>, vector<32x1xf32>
    %cst_11 = arith.constant dense<0.000000e+00> : vector<32x512xf32>
    %28 = tpu.matmul %26, %25, %cst_11 {dimension_numbers = #tpu.dot_dimension_numbers<[1], [0], [0], [1], [0, 0, 1, 1], [], []>} : vector<32x8xf32>, vector<8x512xf32>, vector<32x512xf32> -> vector<32x512xf32>
    %29 = vector.broadcast %27 : vector<32x1xf32> to vector<32x512xf32>
    %30 = arith.addf %28, %29 : vector<32x512xf32>
    %cst_12 = arith.constant 0.000000e+00 : f32
    %31 = vector.broadcast %cst_12 : f32 to vector<32x512xf32>
    %32 = arith.maximumf %30, %31 : vector<32x512xf32>
    %c40 = arith.constant 40 : index
    %c0_13 = arith.constant 0 : index
    %33 = vector.load %arg2[%c40, %c0_13] : memref<800x256xf32, #tpu.memory_space<vmem>>, vector<32x32xf32>
    %c504 = arith.constant 504 : index
    %c0_14 = arith.constant 0 : index
    %34 = vector.load %arg2[%c504, %c0_14] : memref<800x256xf32, #tpu.memory_space<vmem>>, vector<32x1xf32>
    %cst_15 = arith.constant dense<0.000000e+00> : vector<32x512xf32>
    %35 = tpu.matmul %33, %32, %cst_15 {dimension_numbers = #tpu.dot_dimension_numbers<[1], [0], [0], [1], [0, 0, 1, 1], [], []>} : vector<32x32xf32>, vector<32x512xf32>, vector<32x512xf32> -> vector<32x512xf32>
    %36 = vector.broadcast %34 : vector<32x1xf32> to vector<32x512xf32>
    %37 = arith.addf %35, %36 : vector<32x512xf32>
    %38 = math.tanh %37 : vector<32x512xf32>
    %c72 = arith.constant 72 : index
    %c0_16 = arith.constant 0 : index
    %39 = vector.load %arg2[%c72, %c0_16] : memref<800x256xf32, #tpu.memory_space<vmem>>, vector<256x32xf32>
    %c536 = arith.constant 536 : index
    %c0_17 = arith.constant 0 : index
    %40 = vector.load %arg2[%c536, %c0_17] : memref<800x256xf32, #tpu.memory_space<vmem>>, vector<256x1xf32>
    %cst_18 = arith.constant dense<0.000000e+00> : vector<256x512xf32>
    %41 = tpu.matmul %39, %38, %cst_18 {dimension_numbers = #tpu.dot_dimension_numbers<[1], [0], [0], [1], [0, 0, 1, 1], [], []>} : vector<256x32xf32>, vector<32x512xf32>, vector<256x512xf32> -> vector<256x512xf32>
    %42 = vector.broadcast %40 : vector<256x1xf32> to vector<256x512xf32>
    %43 = arith.addf %41, %42 : vector<256x512xf32>
    %cst_19 = arith.constant 0.000000e+00 : f32
    %44 = vector.broadcast %cst_19 : f32 to vector<256x512xf32>
    %45 = arith.maximumf %43, %44 : vector<256x512xf32>
    %c328 = arith.constant 328 : index
    %c0_20 = arith.constant 0 : index
    %46 = vector.load %arg2[%c328, %c0_20] : memref<800x256xf32, #tpu.memory_space<vmem>>, vector<8x256xf32>
    %c792 = arith.constant 792 : index
    %c0_21 = arith.constant 0 : index
    %47 = vector.load %arg2[%c792, %c0_21] : memref<800x256xf32, #tpu.memory_space<vmem>>, vector<8x1xf32>
    %cst_22 = arith.constant dense<0.000000e+00> : vector<8x512xf32>
    %48 = tpu.matmul %46, %45, %cst_22 {dimension_numbers = #tpu.dot_dimension_numbers<[1], [0], [0], [1], [0, 0, 1, 1], [], []>} : vector<8x256xf32>, vector<256x512xf32>, vector<8x512xf32> -> vector<8x512xf32>
    %49 = vector.broadcast %47 : vector<8x1xf32> to vector<8x512xf32>
    %50 = arith.addf %48, %49 : vector<8x512xf32>
    %51 = arith.negf %50 : vector<8x512xf32>
    %52 = math.exp %51 : vector<8x512xf32>
    %cst_23 = arith.constant 1.000000e+00 : f32
    %53 = vector.broadcast %cst_23 : f32 to vector<8x512xf32>
    %54 = arith.addf %53, %52 : vector<8x512xf32>
    %55 = arith.divf %53, %54 : vector<8x512xf32>
    %c0_24 = arith.constant 0 : index
    %c0_25 = arith.constant 0 : index
    %56 = vector.load %arg3[%c0_24, %c0_25] : memref<80x512xf32, #tpu.memory_space<vmem>>, vector<8x512xf32>
    tpu.vector_store %arg3[%c0_24, %c0_25], %55 {strides = array<i32>} : memref<80x512xf32, #tpu.memory_space<vmem>>, vector<8x512xf32>,
    %c8_26 = arith.constant 8 : index
    %c0_27 = arith.constant 0 : index
    %57 = vector.load %arg3[%c8_26, %c0_27] : memref<80x512xf32, #tpu.memory_space<vmem>>, vector<32x512xf32>
    tpu.vector_store %arg3[%c8_26, %c0_27], %32 {strides = array<i32>} : memref<80x512xf32, #tpu.memory_space<vmem>>, vector<32x512xf32>,
    %c40_28 = arith.constant 40 : index
    %c0_29 = arith.constant 0 : index
    %58 = vector.load %arg3[%c40_28, %c0_29] : memref<80x512xf32, #tpu.memory_space<vmem>>, vector<32x512xf32>
    tpu.vector_store %arg3[%c40_28, %c0_29], %38 {strides = array<i32>} : memref<80x512xf32, #tpu.memory_space<vmem>>, vector<32x512xf32>,
    %c72_30 = arith.constant 72 : index
    %c0_31 = arith.constant 0 : index
    %59 = vector.load %arg3[%c72_30, %c0_31] : memref<80x512xf32, #tpu.memory_space<vmem>>, vector<8x512xf32>
    tpu.vector_store %arg3[%c72_30, %c0_31], %23 {strides = array<i32>} : memref<80x512xf32, #tpu.memory_space<vmem>>, vector<8x512xf32>,
    return
  }
  func.func @transform_0(%arg0: i32) -> (i32, i32) {
    %c0_i32 = arith.constant 0 : i32
    %c0_i32_0 = arith.constant 0 : i32
    return %c0_i32, %arg0 : i32, i32
  }
  func.func @transform_1(%arg0: i32) -> (i32, i32) {
    %c0_i32 = arith.constant 0 : i32
    %c0_i32_0 = arith.constant 0 : i32
    %c0_i32_1 = arith.constant 0 : i32
    return %c0_i32, %c0_i32_0 : i32, i32
  }
  func.func @transform_2(%arg0: i32) -> (i32, i32) {
    %c0_i32 = arith.constant 0 : i32
    %c0_i32_0 = arith.constant 0 : i32
    return %c0_i32, %arg0 : i32, i32
  }
}

</mosaic_0001>

<llo_original>
// kernel: afterimage_forward.1
$region0: #{afterimage_forward.1}
  #allocation0 [shape = 'u32[]', space=smem, size = 0x4, offset = 0x4, fixed_abs, tag = 'smem constant byte address 0x4 - core index']
  #allocation1 [shape = 'u32[144,128]{1,0:T(1,128)}', space=vmem, size = 0x12000, scoped, tag = 'internal scratch']
  %s0 = inlined_call_operand.vmem [shape: f32[1,512], index: 0, kind: input, shape index: {}]
  %s1 = inlined_call_operand.vmem [shape: f32[800,256], index: 1, kind: input, shape index: {}]
  %s2 = inlined_call_operand.vmem [shape: f32[80,512], index: 2, kind: output, shape index: {}]
  %s3 = sld [smem:[#allocation0]]
  $region18: #{afterimage_forward.1} parent=0
    _
  %s5 = ssub.s32 1, %s3
  %s6 = scalar_select 0, %s5, %s3
  // Predicated region
  $region2: #{afterimage_forward.1} parent=0 // pred_check
    _
  $region3: #{afterimage_forward.1} parent=0 // pred_check_branch
    %8 = sbr.rel (0) target = $region5
  $region4: #{afterimage_forward.1} parent=0 // pred_region
    _
  $region5: #{afterimage_forward.1} parent=0 // pred_fallthru
    _
  // Predicated region
  $region6: #{afterimage_forward.1} parent=0 // pred_check
    _
  $region7: #{afterimage_forward.1} parent=0 // pred_check_branch
    %10 = sbr.rel (0) target = $region9
  $region8: #{afterimage_forward.1} parent=0 // pred_region
    _
  $region9: #{afterimage_forward.1} parent=0 // pred_fallthru
    _
  %v11 = vld [vmem:[%s0] sm:$0xf]
  %v12 = vld [vmem:[%s1 + $0x2a0] sm:$0xff]
  %v13 = vld [vmem:[%s1 + $0x2b0] sm:$0xff]
  %v14 = vld [vmem:[%s1 + $0x2c0] sm:$0xff]
  %v15 = vld [vmem:[%s1 + $0x2d0] sm:$0xff]
  %v16 = vld [vmem:[%s1 + $0x2e0] sm:$0xff]
  %v17 = vld [vmem:[%s1 + $0x2f0] sm:$0xff]
  %v18 = vld [vmem:[%s1 + $0x300] sm:$0xff]
  %v19 = vld [vmem:[%s1 + $0x310] sm:$0xff]
  %v20 = vld [vmem:[%s1 + $0x320] sm:$0xff]
  %v21 = vld [vmem:[%s1 + $0x330] sm:$0xff]
  %v22 = vld [vmem:[%s1 + $0x340] sm:$0xff]
  %v23 = vld [vmem:[%s1 + $0x350] sm:$0xff]
  %v24 = vld [vmem:[%s1 + $0x360] sm:$0xff]
  %v25 = vld [vmem:[%s1 + $0x370] sm:$0xff]
  %v26 = vld [vmem:[%s1 + $0x380] sm:$0xff]
  %v27 = vld [vmem:[%s1 + $0x390] sm:$0xff]
  %29 = vset.pattern.permute.xlu0 0
  %30 = vperm.xlu0 %29, %v12
  %v31 = vpop.permute.xlu0 %30
  %34 = vset.pattern.permute.xlu0 0
  %35 = vperm.xlu0 %34, %v13
  %v36 = vpop.permute.xlu0 %35
  %39 = vset.pattern.permute.xlu0 0
  %40 = vperm.xlu0 %39, %v14
  %v41 = vpop.permute.xlu0 %40
  %44 = vset.pattern.permute.xlu0 0
  %45 = vperm.xlu0 %44, %v15
  %v46 = vpop.permute.xlu0 %45
  %49 = vset.pattern.permute.xlu0 0
  %50 = vperm.xlu0 %49, %v16
  %v51 = vpop.permute.xlu0 %50
  %54 = vset.pattern.permute.xlu0 0
  %55 = vperm.xlu0 %54, %v17
  %v56 = vpop.permute.xlu0 %55
  %59 = vset.pattern.permute.xlu0 0
  %60 = vperm.xlu0 %59, %v18
  %v61 = vpop.permute.xlu0 %60
  %64 = vset.pattern.permute.xlu0 0
  %65 = vperm.xlu0 %64, %v19
  %v66 = vpop.permute.xlu0 %65
  %v69 = vlaneseq
  %v70 = vshrl.u32 %v69, 7
  %v71 = vsub.s32 0, %v70
  %v72 = vrot.slane %v11, %v71
  %v73 = vlaneseq
  %v74 = vshrl.u32 %v73, 7
  %v75 = vsub.s32 1, %v74
  %v76 = vrot.slane %v11, %v75
  %v77 = vlaneseq
  %v78 = vshrl.u32 %v77, 7
  %v79 = vsub.s32 2, %v78
  %v80 = vrot.slane %v11, %v79
  %v81 = vlaneseq
  %v82 = vshrl.u32 %v81, 7
  %v83 = vsub.s32 3, %v82
  %v84 = vrot.slane %v11, %v83
  %v89 = vmul.f32 %v31, %v72
  %v90 = vmul.f32 %v31, %v76
  %v91 = vmul.f32 %v31, %v80
  %v92 = vmul.f32 %v31, %v84
  %v93 = vmul.f32 %v36, %v72
  %v94 = vmul.f32 %v36, %v76
  %v95 = vmul.f32 %v36, %v80
  %v96 = vmul.f32 %v36, %v84
  %v97 = vmul.f32 %v41, %v72
  %v98 = vmul.f32 %v41, %v76
  %v99 = vmul.f32 %v41, %v80
  %v100 = vmul.f32 %v41, %v84
  %v101 = vmul.f32 %v46, %v72
  %v102 = vmul.f32 %v46, %v76
  %v103 = vmul.f32 %v46, %v80
  %v104 = vmul.f32 %v46, %v84
  %v105 = vmul.f32 %v51, %v72
  %v106 = vmul.f32 %v51, %v76
  %v107 = vmul.f32 %v51, %v80
  %v108 = vmul.f32 %v51, %v84
  %v109 = vmul.f32 %v56, %v72
  %v110 = vmul.f32 %v56, %v76
  %v111 = vmul.f32 %v56, %v80
  %v112 = vmul.f32 %v56, %v84
  %v113 = vmul.f32 %v61, %v72
  %v114 = vmul.f32 %v61, %v76
  %v115 = vmul.f32 %v61, %v80
  %v116 = vmul.f32 %v61, %v84
  %v117 = vmul.f32 %v66, %v72
  %v118 = vmul.f32 %v66, %v76
  %v119 = vmul.f32 %v66, %v80
  %v120 = vmul.f32 %v66, %v84
  %122 = vset.pattern.permute.xlu0 0
  %123 = vperm.xlu0 %122, %v20
  %v124 = vpop.permute.xlu0 %123
  %127 = vset.pattern.permute.xlu0 0
  %128 = vperm.xlu0 %127, %v21
  %v129 = vpop.permute.xlu0 %128
  %132 = vset.pattern.permute.xlu0 0
  %133 = vperm.xlu0 %132, %v22
  %v134 = vpop.permute.xlu0 %133
  %137 = vset.pattern.permute.xlu0 0
  %138 = vperm.xlu0 %137, %v23
  %v139 = vpop.permute.xlu0 %138
  %142 = vset.pattern.permute.xlu0 0
  %143 = vperm.xlu0 %142, %v24
  %v144 = vpop.permute.xlu0 %143
  %147 = vset.pattern.permute.xlu0 0
  %148 = vperm.xlu0 %147, %v25
  %v149 = vpop.permute.xlu0 %148
  %152 = vset.pattern.permute.xlu0 0
  %153 = vperm.xlu0 %152, %v26
  %v154 = vpop.permute.xlu0 %153
  %157 = vset.pattern.permute.xlu0 0
  %158 = vperm.xlu0 %157, %v27
  %v159 = vpop.permute.xlu0 %158
  %v161 = vadd.f32 %v89, %v124
  %v162 = vadd.f32 %v90, %v124
  %v163 = vadd.f32 %v91, %v124
  %v164 = vadd.f32 %v92, %v124
  %v165 = vadd.f32 %v93, %v129
  %v166 = vadd.f32 %v94, %v129
  %v167 = vadd.f32 %v95, %v129
  %v168 = vadd.f32 %v96, %v129
  %v169 = vadd.f32 %v97, %v134
  %v170 = vadd.f32 %v98, %v134
  %v171 = vadd.f32 %v99, %v134
  %v172 = vadd.f32 %v100, %v134
  %v173 = vadd.f32 %v101, %v139
  %v174 = vadd.f32 %v102, %v139
  %v175 = vadd.f32 %v103, %v139
  %v176 = vadd.f32 %v104, %v139
  %v177 = vadd.f32 %v105, %v144
  %v178 = vadd.f32 %v106, %v144
  %v179 = vadd.f32 %v107, %v144
  %v180 = vadd.f32 %v108, %v144
  %v181 = vadd.f32 %v109, %v149
  %v182 = vadd.f32 %v110, %v149
  %v183 = vadd.f32 %v111, %v149
  %v184 = vadd.f32 %v112, %v149
  %v185 = vadd.f32 %v113, %v154
  %v186 = vadd.f32 %v114, %v154
  %v187 = vadd.f32 %v115, %v154
  %v188 = vadd.f32 %v116, %v154
  %v189 = vadd.f32 %v117, %v159
  %v190 = vadd.f32 %v118, %v159
  %v191 = vadd.f32 %v119, %v159
  %v192 = vadd.f32 %v120, %v159
  %v193 = vmax.f32 %v161, 0.0
  %v194 = vmax.f32 %v162, 0.0
  %v195 = vmax.f32 %v163, 0.0
  %v196 = vmax.f32 %v164, 0.0
  %v197 = vmax.f32 %v165, 0.0
  %v198 = vmax.f32 %v166, 0.0
  %v199 = vmax.f32 %v167, 0.0
  %v200 = vmax.f32 %v168, 0.0
  %v201 = vmax.f32 %v169, 0.0
  %v202 = vmax.f32 %v170, 0.0
  %v203 = vmax.f32 %v171, 0.0
  %v204 = vmax.f32 %v172, 0.0
  %v205 = vmax.f32 %v173, 0.0
  %v206 = vmax.f32 %v174, 0.0
  %v207 = vmax.f32 %v175, 0.0
  %v208 = vmax.f32 %v176, 0.0
  %v209 = vmax.f32 %v177, 0.0
  %v210 = vmax.f32 %v178, 0.0
  %v211 = vmax.f32 %v179, 0.0
  %v212 = vmax.f32 %v180, 0.0
  %v213 = vmax.f32 %v181, 0.0
  %v214 = vmax.f32 %v182, 0.0
  %v215 = vmax.f32 %v183, 0.0
  %v216 = vmax.f32 %v184, 0.0
  %v217 = vmax.f32 %v185, 0.0
  %v218 = vmax.f32 %v186, 0.0
  %v219 = vmax.f32 %v187, 0.0
  %v220 = vmax.f32 %v188, 0.0
  %v221 = vmax.f32 %v189, 0.0
  %v222 = vmax.f32 %v190, 0.0
  %v223 = vmax.f32 %v191, 0.0
  %v224 = vmax.f32 %v192, 0.0
  %v225 = vld [vmem:[%s1] sm:$0xff]
  %v226 = vld [vmem:[%s1 + $0x3a0] sm:$0xff]
  %228 = vset.pattern.permute.xlu0 0
  %229 = vperm.xlu0 %228, %v226
  %v230 = vpop.permute.xlu0 %229
  %vm232 = vcmask 523264
  %v234 = vsel %vm232, %v225, 0
  %236 = vmatprep.subr.mxu0 %v194
  %237 = vmatpush1.msra.mxu0 %v193
  %238 = vmatprep.subr.mxu0 %v198
  %239 = vmatpush1.msra.mxu0 %v197
  %240 = vmatprep.subr.mxu0 %v202
  %241 = vmatpush1.msra.mxu0 %v201
  %242 = vmatprep.subr.mxu0 %v206
  %243 = vmatpush1.msra.mxu0 %v205
  %244 = vmatprep.subr.mxu0 %v210
  %245 = vmatpush1.msra.mxu0 %v209
  %246 = vmatprep.subr.mxu0 %v214
  %247 = vmatpush1.msra.mxu0 %v213
  %248 = vmatprep.subr.mxu0 %v218
  %249 = vmatpush1.msra.mxu0 %v217
  %250 = vmatprep.subr.mxu0 %v222
  %251 = vmatpush1.msra.mxu0 %v221
  %252 = vmatprep.subr.mxu0 0.0
  %253 = vmatpush1.msra.mxu0 0.0
  %254 = vmatprep.subr.mxu0 0.0
  %255 = vmatpush1.msra.mxu0 0.0
  %256 = vmatprep.subr.mxu0 0.0
  %257 = vmatpush1.msra.mxu0 0.0
  %258 = vmatprep.subr.mxu0 0.0
  %259 = vmatpush1.msra.mxu0 0.0
  %260 = vmatprep.subr.mxu0 0.0
  %261 = vmatpush1.msra.mxu0 0.0
  %262 = vmatprep.subr.mxu0 0.0
  %263 = vmatpush1.msra.mxu0 0.0
  %264 = vmatprep.subr.mxu0 0.0
  %265 = vmatpush1.msra.mxu0 0.0
  %266 = vmatprep.subr.mxu0 0.0
  %267 = vmatpush1.msra.mxu0 0.0
  %268 = vmatprep.subr.mxu0 0.0
  %269 = vmatpush1.msra.mxu0 0.0
  %270 = vmatprep.subr.mxu0 0.0
  %271 = vmatpush1.msra.mxu0 0.0
  %272 = vmatprep.subr.mxu0 0.0
  %273 = vmatpush1.msra.mxu0 0.0
  %274 = vmatprep.subr.mxu0 0.0
  %275 = vmatpush1.msra.mxu0 0.0
  %276 = vmatprep.subr.mxu0 0.0
  %277 = vmatpush1.msra.mxu0 0.0
  %278 = vmatprep.subr.mxu0 0.0
  %279 = vmatpush1.msra.mxu0 0.0
  %280 = vmatprep.subr.mxu0 0.0
  %281 = vmatpush1.msra.mxu0 0.0
  %282 = vmatprep.subr.mxu0 0.0
  %283 = vmatpush1.msra.mxu0 0.0
  %284 = vmatprep.subr.mxu0 0.0
  %285 = vmatpush1.msra.mxu0 0.0
  %286 = vmatprep.subr.mxu0 0.0
  %287 = vmatpush1.msra.mxu0 0.0
  %288 = vmatprep.subr.mxu0 0.0
  %289 = vmatpush1.msra.mxu0 0.0
  %290 = vmatprep.subr.mxu0 0.0
  %291 = vmatpush1.msra.mxu0 0.0
  %292 = vmatprep.subr.mxu0 0.0
  %293 = vmatpush1.msra.mxu0 0.0
  %294 = vmatprep.subr.mxu0 0.0
  %295 = vmatpush1.msra.mxu0 0.0
  %296 = vmatprep.subr.mxu0 0.0
  %297 = vmatpush1.msra.mxu0 0.0
  %298 = vmatprep.subr.mxu0 0.0
  %299 = vmatpush1.msra.mxu0 0.0
  %300 = vmatprep.mubr.f32.mxu0 0.0
  %301 = vmatmul.mubr.f32.gmra.mrb[0].mxu0 %v234
  %v302 = vpop.f32.mrb[0].mxu0
  %v303 = vadd.f32 %v230, %v302
  %v304 = vpop.f32.mrb[0].mxu0
  %v305 = vadd.f32 %v230, %v304
  %306 = vdwg.mxu0
  %307 = vmatprep.subr.mxu0 %v196
  %308 = vmatpush1.msra.mxu0 %v195
  %309 = vmatprep.subr.mxu0 %v200
  %310 = vmatpush1.msra.mxu0 %v199
  %311 = vmatprep.subr.mxu0 %v204
  %312 = vmatpush1.msra.mxu0 %v203
  %313 = vmatprep.subr.mxu0 %v208
  %314 = vmatpush1.msra.mxu0 %v207
  %315 = vmatprep.subr.mxu0 %v212
  %316 = vmatpush1.msra.mxu0 %v211
  %317 = vmatprep.subr.mxu0 %v216
  %318 = vmatpush1.msra.mxu0 %v215
  %319 = vmatprep.subr.mxu0 %v220
  %320 = vmatpush1.msra.mxu0 %v219
  %321 = vmatprep.subr.mxu0 %v224
  %322 = vmatpush1.msra.mxu0 %v223
  %323 = vmatprep.subr.mxu0 0.0
  %324 = vmatpush1.msra.mxu0 0.0
  %325 = vmatprep.subr.mxu0 0.0
  %326 = vmatpush1.msra.mxu0 0.0
  %327 = vmatprep.subr.mxu0 0.0
  %328 = vmatpush1.msra.mxu0 0.0
  %329 = vmatprep.subr.mxu0 0.0
  %330 = vmatpush1.msra.mxu0 0.0
  %331 = vmatprep.subr.mxu0 0.0
  %332 = vmatpush1.msra.mxu0 0.0
  %333 = vmatprep.subr.mxu0 0.0
  %334 = vmatpush1.msra.mxu0 0.0
  %335 = vmatprep.subr.mxu0 0.0
  %336 = vmatpush1.msra.mxu0 0.0
  %337 = vmatprep.subr.mxu0 0.0
  %338 = vmatpush1.msra.mxu0 0.0
  %339 = vmatprep.subr.mxu0 0.0
  %340 = vmatpush1.msra.mxu0 0.0
  %341 = vmatprep.subr.mxu0 0.0
  %342 = vmatpush1.msra.mxu0 0.0
  %343 = vmatprep.subr.mxu0 0.0
  %344 = vmatpush1.msra.mxu0 0.0
  %345 = vmatprep.subr.mxu0 0.0
  %346 = vmatpush1.msra.mxu0 0.0
  %347 = vmatprep.subr.mxu0 0.0
  %348 = vmatpush1.msra.mxu0 0.0
  %349 = vmatprep.subr.mxu0 0.0
  %350 = vmatpush1.msra.mxu0 0.0
  %351 = vmatprep.subr.mxu0 0.0
  %352 = vmatpush1.msra.mxu0 0.0
  %353 = vmatprep.subr.mxu0 0.0
  %354 = vmatpush1.msra.mxu0 0.0
  %355 = vmatprep.subr.mxu0 0.0
  %356 = vmatpush1.msra.mxu0 0.0
  %357 = vmatprep.subr.mxu0 0.0
  %358 = vmatpush1.msra.mxu0 0.0
  %359 = vmatprep.subr.mxu0 0.0
  %360 = vmatpush1.msra.mxu0 0.0
  %361 = vmatprep.subr.mxu0 0.0
  %362 = vmatpush1.msra.mxu0 0.0
  %363 = vmatprep.subr.mxu0 0.0
  %364 = vmatpush1.msra.mxu0 0.0
  %365 = vmatprep.subr.mxu0 0.0
  %366 = vmatpush1.msra.mxu0 0.0
  %367 = vmatprep.subr.mxu0 0.0
  %368 = vmatpush1.msra.mxu0 0.0
  %369 = vmatprep.subr.mxu0 0.0
  %370 = vmatpush1.msra.mxu0 0.0
  %371 = vmatprep.mubr.f32.mxu0 0.0
  %372 = vmatmul.mubr.f32.gmra.mrb[0].mxu0 %v234
  %v373 = vpop.f32.mrb[0].mxu0
  %v374 = vadd.f32 %v230, %v373
  %v375 = vpop.f32.mrb[0].mxu0
  %v376 = vadd.f32 %v230, %v375
  %377 = vdwg.mxu0
  %v378 = vrot.slane %v303, 4
  %v379 = vmax.f32 %v303, %v378
  %v380 = vrot.slane %v379, 2
  %v381 = vmax.f32 %v379, %v380
  %v382 = vrot.slane %v381, 1
  %v383 = vmax.f32 %v381, %v382
  %v384 = vrot.slane %v305, 4
  %v385 = vmax.f32 %v305, %v384
  %v386 = vrot.slane %v385, 2
  %v387 = vmax.f32 %v385, %v386
  %v388 = vrot.slane %v387, 1
  %v389 = vmax.f32 %v387, %v388
  %v390 = vrot.slane %v374, 4
  %v391 = vmax.f32 %v374, %v390
  %v392 = vrot.slane %v391, 2
  %v393 = vmax.f32 %v391, %v392
  %v394 = vrot.slane %v393, 1
  %v395 = vmax.f32 %v393, %v394
  %v396 = vrot.slane %v376, 4
  %v397 = vmax.f32 %v376, %v396
  %v398 = vrot.slane %v397, 2
  %v399 = vmax.f32 %v397, %v398
  %v400 = vrot.slane %v399, 1
  %v401 = vmax.f32 %v399, %v400
  %v402 = vsub.f32 %v303, %v383
  %v403 = vsub.f32 %v305, %v389
  %v404 = vsub.f32 %v374, %v395
  %v405 = vsub.f32 %v376, %v401
  %v406 = vmul.f32 %v402, 1.442695
  %v407 = vpow.pop %v406
  %v408 = vmul.f32 %v403, 1.442695
  %v409 = vpow.pop %v408
  %v410 = vmul.f32 %v404, 1.442695
  %v411 = vpow.pop %v410
  %v412 = vmul.f32 %v405, 1.442695
  %v413 = vpow.pop %v412
  %v414 = vrot.slane %v407, 4
  %v415 = vadd.f32 %v407, %v414
  %v416 = vrot.slane %v415, 2
  %v417 = vadd.f32 %v415, %v416
  %v418 = vrot.slane %v417, 1
  %v419 = vadd.f32 %v417, %v418
  %v420 = vrot.slane %v409, 4
  %v421 = vadd.f32 %v409, %v420
  %v422 = vrot.slane %v421, 2
  %v423 = vadd.f32 %v421, %v422
  %v424 = vrot.slane %v423, 1
  %v425 = vadd.f32 %v423, %v424
  %v426 = vrot.slane %v411, 4
  %v427 = vadd.f32 %v411, %v426
  %v428 = vrot.slane %v427, 2
  %v429 = vadd.f32 %v427, %v428
  %v430 = vrot.slane %v429, 1
  %v431 = vadd.f32 %v429, %v430
  %v432 = vrot.slane %v413, 4
  %v433 = vadd.f32 %v413, %v432
  %v434 = vrot.slane %v433, 2
  %v435 = vadd.f32 %v433, %v434
  %v436 = vrot.slane %v435, 1
  %v437 = vadd.f32 %v435, %v436
  %v438 = vrcp.pop %v419
  %v439 = vmul.f32 %v407, %v438
  %v440 = vrcp.pop %v425
  %v441 = vmul.f32 %v409, %v440
  %v442 = vrcp.pop %v431
  %v443 = vmul.f32 %v411, %v442
  %v444 = vrcp.pop %v437
  %v445 = vmul.f32 %v413, %v444
  %v446 = vmul.f32 %v439, %v72
  %v447 = vmul.f32 %v441, %v76
  %v448 = vmul.f32 %v443, %v80
  %v449 = vmul.f32 %v445, %v84
  %v450 = vld [vmem:[%s1 + $0x10] sm:$0xff]
  %v451 = vld [vmem:[%s1 + $0x20] sm:$0xff]
  %v452 = vld [vmem:[%s1 + $0x30] sm:$0xff]
  %v453 = vld [vmem:[%s1 + $0x40] sm:$0xff]
  %v454 = vld [vmem:[%s1 + $0x3b0] sm:$0xff]
  %v455 = vld [vmem:[%s1 + $0x3c0] sm:$0xff]
  %v456 = vld [vmem:[%s1 + $0x3d0] sm:$0xff]
  %v457 = vld [vmem:[%s1 + $0x3e0] sm:$0xff]
  %459 = vset.pattern.permute.xlu0 0
  %460 = vperm.xlu0 %459, %v454
  %v461 = vpop.permute.xlu0 %460
  %464 = vset.pattern.permute.xlu0 0
  %465 = vperm.xlu0 %464, %v455
  %v466 = vpop.permute.xlu0 %465
  %469 = vset.pattern.permute.xlu0 0
  %470 = vperm.xlu0 %469, %v456
  %v471 = vpop.permute.xlu0 %470
  %474 = vset.pattern.permute.xlu0 0
  %475 = vperm.xlu0 %474, %v457
  %v476 = vpop.permute.xlu0 %475
  %vm478 = vcmask 64512
  %v480 = vsel %vm478, %v450, 0
  %v483 = vsel %vm478, %v451, 0
  %v486 = vsel %vm478, %v452, 0
  %v489 = vsel %vm478, %v453, 0
  %491 = vmatprep.subr.mxu0 %v447
  %492 = vmatpush1.msra.mxu0 %v446
  %493 = vmatprep.subr.mxu0 0.0
  %494 = vmatpush1.msra.mxu0 0.0
  %495 = vmatprep.subr.mxu0 0.0
  %496 = vmatpush1.msra.mxu0 0.0
  %497 = vmatprep.subr.mxu0 0.0
  %498 = vmatpush1.msra.mxu0 0.0
  %499 = vmatprep.subr.mxu0 0.0
  %500 = vmatpush1.msra.mxu0 0.0
  %501 = vmatprep.subr.mxu0 0.0
  %502 = vmatpush1.msra.mxu0 0.0
  %503 = vmatprep.subr.mxu0 0.0
  %504 = vmatpush1.msra.mxu0 0.0
  %505 = vmatprep.subr.mxu0 0.0
  %506 = vmatpush1.msra.mxu0 0.0
  %507 = vmatprep.subr.mxu0 0.0
  %508 = vmatpush1.msra.mxu0 0.0
  %509 = vmatprep.subr.mxu0 0.0
  %510 = vmatpush1.msra.mxu0 0.0
  %511 = vmatprep.subr.mxu0 0.0
  %512 = vmatpush1.msra.mxu0 0.0
  %513 = vmatprep.subr.mxu0 0.0
  %514 = vmatpush1.msra.mxu0 0.0
  %515 = vmatprep.subr.mxu0 0.0
  %516 = vmatpush1.msra.mxu0 0.0
  %517 = vmatprep.subr.mxu0 0.0
  %518 = vmatpush1.msra.mxu0 0.0
  %519 = vmatprep.subr.mxu0 0.0
  %520 = vmatpush1.msra.mxu0 0.0
  %521 = vmatprep.subr.mxu0 0.0
  %522 = vmatpush1.msra.mxu0 0.0
  %523 = vmatprep.subr.mxu0 0.0
  %524 = vmatpush1.msra.mxu0 0.0
  %525 = vmatprep.subr.mxu0 0.0
  %526 = vmatpush1.msra.mxu0 0.0
  %527 = vmatprep.subr.mxu0 0.0
  %528 = vmatpush1.msra.mxu0 0.0
  %529 = vmatprep.subr.mxu0 0.0
  %530 = vmatpush1.msra.mxu0 0.0
  %531 = vmatprep.subr.mxu0 0.0
  %532 = vmatpush1.msra.mxu0 0.0
  %533 = vmatprep.subr.mxu0 0.0
  %534 = vmatpush1.msra.mxu0 0.0
  %535 = vmatprep.subr.mxu0 0.0
  %536 = vmatpush1.msra.mxu0 0.0
  %537 = vmatprep.subr.mxu0 0.0
  %538 = vmatpush1.msra.mxu0 0.0
  %539 = vmatprep.subr.mxu0 0.0
  %540 = vmatpush1.msra.mxu0 0.0
  %541 = vmatprep.subr.mxu0 0.0
  %542 = vmatpush1.msra.mxu0 0.0
  %543 = vmatprep.subr.mxu0 0.0
  %544 = vmatpush1.msra.mxu0 0.0
  %545 = vmatprep.subr.mxu0 0.0
  %546 = vmatpush1.msra.mxu0 0.0
  %547 = vmatprep.subr.mxu0 0.0
  %548 = vmatpush1.msra.mxu0 0.0
  %549 = vmatprep.subr.mxu0 0.0
  %550 = vmatpush1.msra.mxu0 0.0
  %551 = vmatprep.subr.mxu0 0.0
  %552 = vmatpush1.msra.mxu0 0.0
  %553 = vmatprep.subr.mxu0 0.0
  %554 = vmatpush1.msra.mxu0 0.0
  %555 = vmatprep.mubr.f32.mxu0 0.0
  %556 = vmatmul.mubr.f32.gmra.mrb[0].mxu0 %v480
  %v557 = vpop.f32.mrb[0].mxu0
  %v558 = vadd.f32 %v461, %v557
  %v559 = vpop.f32.mrb[0].mxu0
  %v560 = vadd.f32 %v461, %v559
  %561 = vmatprep.mubr.f32.mxu0 0.0
  %562 = vmatmul.mubr.f32.gmra.mrb[0].mxu0 %v483
  %v563 = vpop.f32.mrb[0].mxu0
  %v564 = vadd.f32 %v466, %v563
  %v565 = vpop.f32.mrb[0].mxu0
  %v566 = vadd.f32 %v466, %v565
  %567 = vmatprep.mubr.f32.mxu0 0.0
  %568 = vmatmul.mubr.f32.gmra.mrb[0].mxu0 %v486
  %v569 = vpop.f32.mrb[0].mxu0
  %v570 = vadd.f32 %v471, %v569
  %v571 = vpop.f32.mrb[0].mxu0
  %v572 = vadd.f32 %v471, %v571
  %573 = vmatprep.mubr.f32.mxu0 0.0
  %574 = vmatmul.mubr.f32.gmra.mrb[0].mxu0 %v489
  %v575 = vpop.f32.mrb[0].mxu0
  %v576 = vadd.f32 %v476, %v575
  %v577 = vpop.f32.mrb[0].mxu0
  %v578 = vadd.f32 %v476, %v577
  %579 = vdwg.mxu0
  %580 = vmatprep.subr.mxu0 %v449
  %581 = vmatpush1.msra.mxu0 %v448
  %582 = vmatprep.subr.mxu0 0.0
  %583 = vmatpush1.msra.mxu0 0.0
  %584 = vmatprep.subr.mxu0 0.0
  %585 = vmatpush1.msra.mxu0 0.0
  %586 = vmatprep.subr.mxu0 0.0
  %587 = vmatpush1.msra.mxu0 0.0
  %588 = vmatprep.subr.mxu0 0.0
  %589 = vmatpush1.msra.mxu0 0.0
  %590 = vmatprep.subr.mxu0 0.0
  %591 = vmatpush1.msra.mxu0 0.0
  %592 = vmatprep.subr.mxu0 0.0
  %593 = vmatpush1.msra.mxu0 0.0
  %594 = vmatprep.subr.mxu0 0.0
  %595 = vmatpush1.msra.mxu0 0.0
  %596 = vmatprep.subr.mxu0 0.0
  %597 = vmatpush1.msra.mxu0 0.0
  %598 = vmatprep.subr.mxu0 0.0
  %599 = vmatpush1.msra.mxu0 0.0
  %600 = vmatprep.subr.mxu0 0.0
  %601 = vmatpush1.msra.mxu0 0.0
  %602 = vmatprep.subr.mxu0 0.0
  %603 = vmatpush1.msra.mxu0 0.0
  %604 = vmatprep.subr.mxu0 0.0
  %605 = vmatpush1.msra.mxu0 0.0
  %606 = vmatprep.subr.mxu0 0.0
  %607 = vmatpush1.msra.mxu0 0.0
  %608 = vmatprep.subr.mxu0 0.0
  %609 = vmatpush1.msra.mxu0 0.0
  %610 = vmatprep.subr.mxu0 0.0
  %611 = vmatpush1.msra.mxu0 0.0
  %612 = vmatprep.subr.mxu0 0.0
  %613 = vmatpush1.msra.mxu0 0.0
  %614 = vmatprep.subr.mxu0 0.0
  %615 = vmatpush1.msra.mxu0 0.0
  %616 = vmatprep.subr.mxu0 0.0
  %617 = vmatpush1.msra.mxu0 0.0
  %618 = vmatprep.subr.mxu0 0.0
  %619 = vmatpush1.msra.mxu0 0.0
  %620 = vmatprep.subr.mxu0 0.0
  %621 = vmatpush1.msra.mxu0 0.0
  %622 = vmatprep.subr.mxu0 0.0
  %623 = vmatpush1.msra.mxu0 0.0
  %624 = vmatprep.subr.mxu0 0.0
  %625 = vmatpush1.msra.mxu0 0.0
  %626 = vmatprep.subr.mxu0 0.0
  %627 = vmatpush1.msra.mxu0 0.0
  %628 = vmatprep.subr.mxu0 0.0
  %629 = vmatpush1.msra.mxu0 0.0
  %630 = vmatprep.subr.mxu0 0.0
  %631 = vmatpush1.msra.mxu0 0.0
  %632 = vmatprep.subr.mxu0 0.0
  %633 = vmatpush1.msra.mxu0 0.0
  %634 = vmatprep.subr.mxu0 0.0
  %635 = vmatpush1.msra.mxu0 0.0
  %636 = vmatprep.subr.mxu0 0.0
  %637 = vmatpush1.msra.mxu0 0.0
  %638 = vmatprep.subr.mxu0 0.0
  %639 = vmatpush1.msra.mxu0 0.0
  %640 = vmatprep.subr.mxu0 0.0
  %641 = vmatpush1.msra.mxu0 0.0
  %642 = vmatprep.subr.mxu0 0.0
  %643 = vmatpush1.msra.mxu0 0.0
  %644 = vmatprep.mubr.f32.mxu0 0.0
  %645 = vmatmul.mubr.f32.gmra.mrb[0].mxu0 %v480
  %v646 = vpop.f32.mrb[0].mxu0
  %v647 = vadd.f32 %v461, %v646
  %v648 = vpop.f32.mrb[0].mxu0
  %v649 = vadd.f32 %v461, %v648
  %650 = vmatprep.mubr.f32.mxu0 0.0
  %651 = vmatmul.mubr.f32.gmra.mrb[0].mxu0 %v483
  %v652 = vpop.f32.mrb[0].mxu0
  %v653 = vadd.f32 %v466, %v652
  %v654 = vpop.f32.mrb[0].mxu0
  %v655 = vadd.f32 %v466, %v654
  %656 = vmatprep.mubr.f32.mxu0 0.0
  %657 = vmatmul.mubr.f32.gmra.mrb[0].mxu0 %v486
  %v658 = vpop.f32.mrb[0].mxu0
  %v659 = vadd.f32 %v471, %v658
  %v660 = vpop.f32.mrb[0].mxu0
  %v661 = vadd.f32 %v471, %v660
  %662 = vmatprep.mubr.f32.mxu0 0.0
  %663 = vmatmul.mubr.f32.gmra.mrb[0].mxu0 %v489
  %v664 = vpop.f32.mrb[0].mxu0
  %v665 = vadd.f32 %v476, %v664
  %v666 = vpop.f32.mrb[0].mxu0
  %v667 = vadd.f32 %v476, %v666
  %668 = vdwg.mxu0
  %v669 = vmax.f32 %v558, 0.0
  %v670 = vmax.f32 %v560, 0.0
  %v671 = vmax.f32 %v647, 0.0
  %v672 = vmax.f32 %v649, 0.0
  %v673 = vmax.f32 %v564, 0.0
  %v674 = vmax.f32 %v566, 0.0
  %v675 = vmax.f32 %v653, 0.0
  %v676 = vmax.f32 %v655, 0.0
  %v677 = vmax.f32 %v570, 0.0
  %v678 = vmax.f32 %v572, 0.0
  %v679 = vmax.f32 %v659, 0.0
  %v680 = vmax.f32 %v661, 0.0
  %v681 = vmax.f32 %v576, 0.0
  %v682 = vmax.f32 %v578, 0.0
  %v683 = vmax.f32 %v665, 0.0
  %v684 = vmax.f32 %v667, 0.0
  %v685 = vld [vmem:[%s1 + $0x50] sm:$0xff]
  %v686 = vld [vmem:[%s1 + $0x60] sm:$0xff]
  %v687 = vld [vmem:[%s1 + $0x70] sm:$0xff]
  %v688 = vld [vmem:[%s1 + $0x80] sm:$0xff]
  %v689 = vld [vmem:[%s1 + $0x3f0] sm:$0xff]
  %v690 = vld [vmem:[%s1 + $0x400] sm:$0xff]
  %v691 = vld [vmem:[%s1 + $0x410] sm:$0xff]
  %v692 = vld [vmem:[%s1 + $0x420] sm:$0xff]
  %694 = vset.pattern.permute.xlu0 0
  %695 = vperm.xlu0 %694, %v689
  %v696 = vpop.permute.xlu0 %695
  %699 = vset.pattern.permute.xlu0 0
  %700 = vperm.xlu0 %699, %v690
  %v701 = vpop.permute.xlu0 %700
  %704 = vset.pattern.permute.xlu0 0
  %705 = vperm.xlu0 %704, %v691
  %v706 = vpop.permute.xlu0 %705
  %709 = vset.pattern.permute.xlu0 0
  %710 = vperm.xlu0 %709, %v692
  %v711 = vpop.permute.xlu0 %710
  %vm713 = vcmask 261120
  %v715 = vsel %vm713, %v685, 0
  %v718 = vsel %vm713, %v686, 0
  %v721 = vsel %vm713, %v687, 0
  %v724 = vsel %vm713, %v688, 0
  %726 = vmatprep.subr.mxu0 %v670
  %727 = vmatpush1.msra.mxu0 %v669
  %728 = vmatprep.subr.mxu0 %v674
  %729 = vmatpush1.msra.mxu0 %v673
  %730 = vmatprep.subr.mxu0 %v678
  %731 = vmatpush1.msra.mxu0 %v677
  %732 = vmatprep.subr.mxu0 %v682
  %733 = vmatpush1.msra.mxu0 %v681
  %734 = vmatprep.subr.mxu0 0.0
  %735 = vmatpush1.msra.mxu0 0.0
  %736 = vmatprep.subr.mxu0 0.0
  %737 = vmatpush1.msra.mxu0 0.0
  %738 = vmatprep.subr.mxu0 0.0
  %739 = vmatpush1.msra.mxu0 0.0
  %740 = vmatprep.subr.mxu0 0.0
  %741 = vmatpush1.msra.mxu0 0.0
  %742 = vmatprep.subr.mxu0 0.0
  %743 = vmatpush1.msra.mxu0 0.0
  %744 = vmatprep.subr.mxu0 0.0
  %745 = vmatpush1.msra.mxu0 0.0
  %746 = vmatprep.subr.mxu0 0.0
  %747 = vmatpush1.msra.mxu0 0.0
  %748 = vmatprep.subr.mxu0 0.0
  %749 = vmatpush1.msra.mxu0 0.0
  %750 = vmatprep.subr.mxu0 0.0
  %751 = vmatpush1.msra.mxu0 0.0
  %752 = vmatprep.subr.mxu0 0.0
  %753 = vmatpush1.msra.mxu0 0.0
  %754 = vmatprep.subr.mxu0 0.0
  %755 = vmatpush1.msra.mxu0 0.0
  %756 = vmatprep.subr.mxu0 0.0
  %757 = vmatpush1.msra.mxu0 0.0
  %758 = vmatprep.subr.mxu0 0.0
  %759 = vmatpush1.msra.mxu0 0.0
  %760 = vmatprep.subr.mxu0 0.0
  %761 = vmatpush1.msra.mxu0 0.0
  %762 = vmatprep.subr.mxu0 0.0
  %763 = vmatpush1.msra.mxu0 0.0
  %764 = vmatprep.subr.mxu0 0.0
  %765 = vmatpush1.msra.mxu0 0.0
  %766 = vmatprep.subr.mxu0 0.0
  %767 = vmatpush1.msra.mxu0 0.0
  %768 = vmatprep.subr.mxu0 0.0
  %769 = vmatpush1.msra.mxu0 0.0
  %770 = vmatprep.subr.mxu0 0.0
  %771 = vmatpush1.msra.mxu0 0.0
  %772 = vmatprep.subr.mxu0 0.0
  %773 = vmatpush1.msra.mxu0 0.0
  %774 = vmatprep.subr.mxu0 0.0
  %775 = vmatpush1.msra.mxu0 0.0
  %776 = vmatprep.subr.mxu0 0.0
  %777 = vmatpush1.msra.mxu0 0.0
  %778 = vmatprep.subr.mxu0 0.0
  %779 = vmatpush1.msra.mxu0 0.0
  %780 = vmatprep.subr.mxu0 0.0
  %781 = vmatpush1.msra.mxu0 0.0
  %782 = vmatprep.subr.mxu0 0.0
  %783 = vmatpush1.msra.mxu0 0.0
  %784 = vmatprep.subr.mxu0 0.0
  %785 = vmatpush1.msra.mxu0 0.0
  %786 = vmatprep.subr.mxu0 0.0
  %787 = vmatpush1.msra.mxu0 0.0
  %788 = vmatprep.subr.mxu0 0.0
  %789 = vmatpush1.msra.mxu0 0.0
  %790 = vmatprep.mubr.f32.mxu0 0.0
  %791 = vmatmul.mubr.f32.gmra.mrb[0].mxu0 %v715
  %v792 = vpop.f32.mrb[0].mxu0
  %v793 = vadd.f32 %v696, %v792
  %v794 = vpop.f32.mrb[0].mxu0
  %v795 = vadd.f32 %v696, %v794
  %796 = vmatprep.mubr.f32.mxu0 0.0
  %797 = vmatmul.mubr.f32.gmra.mrb[0].mxu0 %v718
  %v798 = vpop.f32.mrb[0].mxu0
  %v799 = vadd.f32 %v701, %v798
  %v800 = vpop.f32.mrb[0].mxu0
  %v801 = vadd.f32 %v701, %v800
  %802 = vmatprep.mubr.f32.mxu0 0.0
  %803 = vmatmul.mubr.f32.gmra.mrb[0].mxu0 %v721
  %v804 = vpop.f32.mrb[0].mxu0
  %v805 = vadd.f32 %v706, %v804
  %v806 = vpop.f32.mrb[0].mxu0
  %v807 = vadd.f32 %v706, %v806
  %808 = vmatprep.mubr.f32.mxu0 0.0
  %809 = vmatmul.mubr.f32.gmra.mrb[0].mxu0 %v724
  %v810 = vpop.f32.mrb[0].mxu0
  %v811 = vadd.f32 %v711, %v810
  %v812 = vpop.f32.mrb[0].mxu0
  %v813 = vadd.f32 %v711, %v812
  %814 = vdwg.mxu0
  %815 = vmatprep.subr.mxu0 %v672
  %816 = vmatpush1.msra.mxu0 %v671
  %817 = vmatprep.subr.mxu0 %v676
  %818 = vmatpush1.msra.mxu0 %v675
  %819 = vmatprep.subr.mxu0 %v680
  %820 = vmatpush1.msra.mxu0 %v679
  %821 = vmatprep.subr.mxu0 %v684
  %822 = vmatpush1.msra.mxu0 %v683
  %823 = vmatprep.subr.mxu0 0.0
  %824 = vmatpush1.msra.mxu0 0.0
  %825 = vmatprep.subr.mxu0 0.0
  %826 = vmatpush1.msra.mxu0 0.0
  %827 = vmatprep.subr.mxu0 0.0
  %828 = vmatpush1.msra.mxu0 0.0
  %829 = vmatprep.subr.mxu0 0.0
  %830 = vmatpush1.msra.mxu0 0.0
  %831 = vmatprep.subr.mxu0 0.0
  %832 = vmatpush1.msra.mxu0 0.0
  %833 = vmatprep.subr.mxu0 0.0
  %834 = vmatpush1.msra.mxu0 0.0
  %835 = vmatprep.subr.mxu0 0.0
  %836 = vmatpush1.msra.mxu0 0.0
  %837 = vmatprep.subr.mxu0 0.0
  %838 = vmatpush1.msra.mxu0 0.0
  %839 = vmatprep.subr.mxu0 0.0
  %840 = vmatpush1.msra.mxu0 0.0
  %841 = vmatprep.subr.mxu0 0.0
  %842 = vmatpush1.msra.mxu0 0.0
  %843 = vmatprep.subr.mxu0 0.0
  %844 = vmatpush1.msra.mxu0 0.0
  %845 = vmatprep.subr.mxu0 0.0
  %846 = vmatpush1.msra.mxu0 0.0
  %847 = vmatprep.subr.mxu0 0.0
  %848 = vmatpush1.msra.mxu0 0.0
  %849 = vmatprep.subr.mxu0 0.0
  %850 = vmatpush1.msra.mxu0 0.0
  %851 = vmatprep.subr.mxu0 0.0
  %852 = vmatpush1.msra.mxu0 0.0
  %853 = vmatprep.subr.mxu0 0.0
  %854 = vmatpush1.msra.mxu0 0.0
  %855 = vmatprep.subr.mxu0 0.0
  %856 = vmatpush1.msra.mxu0 0.0
  %857 = vmatprep.subr.mxu0 0.0
  %858 = vmatpush1.msra.mxu0 0.0
  %859 = vmatprep.subr.mxu0 0.0
  %860 = vmatpush1.msra.mxu0 0.0
  %861 = vmatprep.subr.mxu0 0.0
  %862 = vmatpush1.msra.mxu0 0.0
  %863 = vmatprep.subr.mxu0 0.0
  %864 = vmatpush1.msra.mxu0 0.0
  %865 = vmatprep.subr.mxu0 0.0
  %866 = vmatpush1.msra.mxu0 0.0
  %867 = vmatprep.subr.mxu0 0.0
  %868 = vmatpush1.msra.mxu0 0.0
  %869 = vmatprep.subr.mxu0 0.0
  %870 = vmatpush1.msra.mxu0 0.0
  %871 = vmatprep.subr.mxu0 0.0
  %872 = vmatpush1.msra.mxu0 0.0
  %873 = vmatprep.subr.mxu0 0.0
  %874 = vmatpush1.msra.mxu0 0.0
  %875 = vmatprep.subr.mxu0 0.0
  %876 = vmatpush1.msra.mxu0 0.0
  %877 = vmatprep.subr.mxu0 0.0
  %878 = vmatpush1.msra.mxu0 0.0
  %879 = vmatprep.mubr.f32.mxu0 0.0
  %880 = vmatmul.mubr.f32.gmra.mrb[0].mxu0 %v715
  %v881 = vpop.f32.mrb[0].mxu0
  %v882 = vadd.f32 %v696, %v881
  %v883 = vpop.f32.mrb[0].mxu0
  %v884 = vadd.f32 %v696, %v883
  %885 = vmatprep.mubr.f32.mxu0 0.0
  %886 = vmatmul.mubr.f32.gmra.mrb[0].mxu0 %v718
  %v887 = vpop.f32.mrb[0].mxu0
  %v888 = vadd.f32 %v701, %v887
  %v889 = vpop.f32.mrb[0].mxu0
  %v890 = vadd.f32 %v701, %v889
  %891 = vmatprep.mubr.f32.mxu0 0.0
  %892 = vmatmul.mubr.f32.gmra.mrb[0].mxu0 %v721
  %v893 = vpop.f32.mrb[0].mxu0
  %v894 = vadd.f32 %v706, %v893
  %v895 = vpop.f32.mrb[0].mxu0
  %v896 = vadd.f32 %v706, %v895
  %897 = vmatprep.mubr.f32.mxu0 0.0
  %898 = vmatmul.mubr.f32.gmra.mrb[0].mxu0 %v724
  %v899 = vpop.f32.mrb[0].mxu0
  %v900 = vadd.f32 %v711, %v899
  %v901 = vpop.f32.mrb[0].mxu0
  %v902 = vadd.f32 %v711, %v901
  %903 = vdwg.mxu0
  %v904 = vtanh.pop %v793
  %v905 = vtanh.pop %v795
  %v906 = vtanh.pop %v882
  %v907 = vtanh.pop %v884
  %v908 = vtanh.pop %v799
  %v909 = vtanh.pop %v801
  %v910 = vtanh.pop %v888
  %v911 = vtanh.pop %v890
  %v912 = vtanh.pop %v805
  %v913 = vtanh.pop %v807
  %v914 = vtanh.pop %v894
  %v915 = vtanh.pop %v896
  %v916 = vtanh.pop %v811
  %v917 = vtanh.pop %v813
  %v918 = vtanh.pop %v900
  %v919 = vtanh.pop %v902
  %v920 = vld [vmem:[%s1 + $0x90] sm:$0xff]
  %v921 = vld [vmem:[%s1 + $0xa0] sm:$0xff]
  %v922 = vld [vmem:[%s1 + $0xb0] sm:$0xff]
  %v923 = vld [vmem:[%s1 + $0xc0] sm:$0xff]
  %v924 = vld [vmem:[%s1 + $0xd0] sm:$0xff]
  %v925 = vld [vmem:[%s1 + $0xe0] sm:$0xff]
  %v926 = vld [vmem:[%s1 + $0xf0] sm:$0xff]
  %v927 = vld [vmem:[%s1 + $0x100] sm:$0xff]
  %v928 = vld [vmem:[%s1 + $0x110] sm:$0xff]
  %v929 = vld [vmem:[%s1 + $0x120] sm:$0xff]
  %v930 = vld [vmem:[%s1 + $0x130] sm:$0xff]
  %v931 = vld [vmem:[%s1 + $0x140] sm:$0xff]
  %v932 = vld [vmem:[%s1 + $0x150] sm:$0xff]
  %v933 = vld [vmem:[%s1 + $0x160] sm:$0xff]
  %v934 = vld [vmem:[%s1 + $0x170] sm:$0xff]
  %v935 = vld [vmem:[%s1 + $0x180] sm:$0xff]
  %v936 = vld [vmem:[%s1 + $0x190] sm:$0xff]
  %v937 = vld [vmem:[%s1 + $0x1a0] sm:$0xff]
  %v938 = vld [vmem:[%s1 + $0x1b0] sm:$0xff]
  %v939 = vld [vmem:[%s1 + $0x1c0] sm:$0xff]
  %v940 = vld [vmem:[%s1 + $0x1d0] sm:$0xff]
  %v941 = vld [vmem:[%s1 + $0x1e0] sm:$0xff]
  %v942 = vld [vmem:[%s1 + $0x1f0] sm:$0xff]
  %v943 = vld [vmem:[%s1 + $0x200] sm:$0xff]
  %v944 = vld [vmem:[%s1 + $0x210] sm:$0xff]
  %v945 = vld [vmem:[%s1 + $0x220] sm:$0xff]
  %v946 = vld [vmem:[%s1 + $0x230] sm:$0xff]
  %v947 = vld [vmem:[%s1 + $0x240] sm:$0xff]
  %v948 = vld [vmem:[%s1 + $0x250] sm:$0xff]
  %v949 = vld [vmem:[%s1 + $0x260] sm:$0xff]
  %v950 = vld [vmem:[%s1 + $0x270] sm:$0xff]
  %v951 = vld [vmem:[%s1 + $0x280] sm:$0xff]
  %v952 = vld [vmem:[%s1 + $0x430] sm:$0xff]
  %v953 = vld [vmem:[%s1 + $0x440] sm:$0xff]
  %v954 = vld [vmem:[%s1 + $0x450] sm:$0xff]
  %v955 = vld [vmem:[%s1 + $0x460] sm:$0xff]
  %v956 = vld [vmem:[%s1 + $0x470] sm:$0xff]
  %v957 = vld [vmem:[%s1 + $0x480] sm:$0xff]
  %v958 = vld [vmem:[%s1 + $0x490] sm:$0xff]
  %v959 = vld [vmem:[%s1 + $0x4a0] sm:$0xff]
  %v960 = vld [vmem:[%s1 + $0x4b0] sm:$0xff]
  %v961 = vld [vmem:[%s1 + $0x4c0] sm:$0xff]
  %v962 = vld [vmem:[%s1 + $0x4d0] sm:$0xff]
  %v963 = vld [vmem:[%s1 + $0x4e0] sm:$0xff]
  %v964 = vld [vmem:[%s1 + $0x4f0] sm:$0xff]
  %v965 = vld [vmem:[%s1 + $0x500] sm:$0xff]
  %v966 = vld [vmem:[%s1 + $0x510] sm:$0xff]
  %v967 = vld [vmem:[%s1 + $0x520] sm:$0xff]
  %v968 = vld [vmem:[%s1 + $0x530] sm:$0xff]
  %v969 = vld [vmem:[%s1 + $0x540] sm:$0xff]
  %v970 = vld [vmem:[%s1 + $0x550] sm:$0xff]
  %v971 = vld [vmem:[%s1 + $0x560] sm:$0xff]
  %v972 = vld [vmem:[%s1 + $0x570] sm:$0xff]
  %v973 = vld [vmem:[%s1 + $0x580] sm:$0xff]
  %v974 = vld [vmem:[%s1 + $0x590] sm:$0xff]
  %v975 = vld [vmem:[%s1 + $0x5a0] sm:$0xff]
  %v976 = vld [vmem:[%s1 + $0x5b0] sm:$0xff]
  %v977 = vld [vmem:[%s1 + $0x5c0] sm:$0xff]
  %v978 = vld [vmem:[%s1 + $0x5d0] sm:$0xff]
  %v979 = vld [vmem:[%s1 + $0x5e0] sm:$0xff]
  %v980 = vld [vmem:[%s1 + $0x5f0] sm:$0xff]
  %v981 = vld [vmem:[%s1 + $0x600] sm:$0xff]
  %v982 = vld [vmem:[%s1 + $0x610] sm:$0xff]
  %v983 = vld [vmem:[%s1 + $0x620] sm:$0xff]
  %985 = vset.pattern.permute.xlu0 0
  %986 = vperm.xlu0 %985, %v952
  %v987 = vpop.permute.xlu0 %986
  %990 = vset.pattern.permute.xlu0 0
  %991 = vperm.xlu0 %990, %v953
  %v992 = vpop.permute.xlu0 %991
  %995 = vset.pattern.permute.xlu0 0
  %996 = vperm.xlu0 %995, %v954
  %v997 = vpop.permute.xlu0 %996
  %1000 = vset.pattern.permute.xlu0 0
  %1001 = vperm.xlu0 %1000, %v955
  %v1002 = vpop.permute.xlu0 %1001
  %1005 = vset.pattern.permute.xlu0 0
  %1006 = vperm.xlu0 %1005, %v956
  %v1007 = vpop.permute.xlu0 %1006
  %1010 = vset.pattern.permute.xlu0 0
  %1011 = vperm.xlu0 %1010, %v957
  %v1012 = vpop.permute.xlu0 %1011
  %1015 = vset.pattern.permute.xlu0 0
  %1016 = vperm.xlu0 %1015, %v958
  %v1017 = vpop.permute.xlu0 %1016
  %1020 = vset.pattern.permute.xlu0 0
  %1021 = vperm.xlu0 %1020, %v959
  %v1022 = vpop.permute.xlu0 %1021
  %1025 = vset.pattern.permute.xlu0 0
  %1026 = vperm.xlu0 %1025, %v960
  %v1027 = vpop.permute.xlu0 %1026
  %1030 = vset.pattern.permute.xlu0 0
  %1031 = vperm.xlu0 %1030, %v961
  %v1032 = vpop.permute.xlu0 %1031
  %1035 = vset.pattern.permute.xlu0 0
  %1036 = vperm.xlu0 %1035, %v962
  %v1037 = vpop.permute.xlu0 %1036
  %1040 = vset.pattern.permute.xlu0 0
  %1041 = vperm.xlu0 %1040, %v963
  %v1042 = vpop.permute.xlu0 %1041
  %1045 = vset.pattern.permute.xlu0 0
  %1046 = vperm.xlu0 %1045, %v964
  %v1047 = vpop.permute.xlu0 %1046
  %1050 = vset.pattern.permute.xlu0 0
  %1051 = vperm.xlu0 %1050, %v965
  %v1052 = vpop.permute.xlu0 %1051
  %1055 = vset.pattern.permute.xlu0 0
  %1056 = vperm.xlu0 %1055, %v966
  %v1057 = vpop.permute.xlu0 %1056
  %1060 = vset.pattern.permute.xlu0 0
  %1061 = vperm.xlu0 %1060, %v967
  %v1062 = vpop.permute.xlu0 %1061
  %1065 = vset.pattern.permute.xlu0 0
  %1066 = vperm.xlu0 %1065, %v968
  %v1067 = vpop.permute.xlu0 %1066
  %1070 = vset.pattern.permute.xlu0 0
  %1071 = vperm.xlu0 %1070, %v969
  %v1072 = vpop.permute.xlu0 %1071
  %1075 = vset.pattern.permute.xlu0 0
  %1076 = vperm.xlu0 %1075, %v970
  %v1077 = vpop.permute.xlu0 %1076
  %1080 = vset.pattern.permute.xlu0 0
  %1081 = vperm.xlu0 %1080, %v971
  %v1082 = vpop.permute.xlu0 %1081
  %1085 = vset.pattern.permute.xlu0 0
  %1086 = vperm.xlu0 %1085, %v972
  %v1087 = vpop.permute.xlu0 %1086
  %1090 = vset.pattern.permute.xlu0 0
  %1091 = vperm.xlu0 %1090, %v973
  %v1092 = vpop.permute.xlu0 %1091
  %1095 = vset.pattern.permute.xlu0 0
  %1096 = vperm.xlu0 %1095, %v974
  %v1097 = vpop.permute.xlu0 %1096
  %1100 = vset.pattern.permute.xlu0 0
  %1101 = vperm.xlu0 %1100, %v975
  %v1102 = vpop.permute.xlu0 %1101
  %1105 = vset.pattern.permute.xlu0 0
  %1106 = vperm.xlu0 %1105, %v976
  %v1107 = vpop.permute.xlu0 %1106
  %1110 = vset.pattern.permute.xlu0 0
  %1111 = vperm.xlu0 %1110, %v977
  %v1112 = vpop.permute.xlu0 %1111
  %1115 = vset.pattern.permute.xlu0 0
  %1116 = vperm.xlu0 %1115, %v978
  %v1117 = vpop.permute.xlu0 %1116
  %1120 = vset.pattern.permute.xlu0 0
  %1121 = vperm.xlu0 %1120, %v979
  %v1122 = vpop.permute.xlu0 %1121
  %1125 = vset.pattern.permute.xlu0 0
  %1126 = vperm.xlu0 %1125, %v980
  %v1127 = vpop.permute.xlu0 %1126
  %1130 = vset.pattern.permute.xlu0 0
  %1131 = vperm.xlu0 %1130, %v981
  %v1132 = vpop.permute.xlu0 %1131
  %1135 = vset.pattern.permute.xlu0 0
  %1136 = vperm.xlu0 %1135, %v982
  %v1137 = vpop.permute.xlu0 %1136
  %1140 = vset.pattern.permute.xlu0 0
  %1141 = vperm.xlu0 %1140, %v983
  %v1142 = vpop.permute.xlu0 %1141
  %v1145 = vsel %vm713, %v920, 0
  %v1148 = vsel %vm713, %v921, 0
  %v1151 = vsel %vm713, %v922, 0
  %v1154 = vsel %vm713, %v923, 0
  %v1157 = vsel %vm713, %v924, 0
  %v1160 = vsel %vm713, %v925, 0
  %v1163 = vsel %vm713, %v926, 0
  %v1166 = vsel %vm713, %v927, 0
  %v1169 = vsel %vm713, %v928, 0
  %v1172 = vsel %vm713, %v929, 0
  %v1175 = vsel %vm713, %v930, 0
  %v1178 = vsel %vm713, %v931, 0
  %v1181 = vsel %vm713, %v932, 0
  %v1184 = vsel %vm713, %v933, 0
  %v1187 = vsel %vm713, %v934, 0
  %v1190 = vsel %vm713, %v935, 0
  %v1193 = vsel %vm713, %v936, 0
  %v1196 = vsel %vm713, %v937, 0
  %v1199 = vsel %vm713, %v938, 0
  %v1202 = vsel %vm713, %v939, 0
  %v1205 = vsel %vm713, %v940, 0
  %v1208 = vsel %vm713, %v941, 0
  %v1211 = vsel %vm713, %v942, 0
  %v1214 = vsel %vm713, %v943, 0
  %v1217 = vsel %vm713, %v944, 0
  %v1220 = vsel %vm713, %v945, 0
  %v1223 = vsel %vm713, %v946, 0
  %v1226 = vsel %vm713, %v947, 0
  %v1229 = vsel %vm713, %v948, 0
  %v1232 = vsel %vm713, %v949, 0
  %v1235 = vsel %vm713, %v950, 0
  %v1238 = vsel %vm713, %v951, 0
  %1240 = vmatprep.subr.mxu0 %v905
  %1241 = vmatpush1.msra.mxu0 %v904
  %1242 = vmatprep.subr.mxu0 %v909
  %1243 = vmatpush1.msra.mxu0 %v908
  %1244 = vmatprep.subr.mxu0 %v913
  %1245 = vmatpush1.msra.mxu0 %v912
  %1246 = vmatprep.subr.mxu0 %v917
  %1247 = vmatpush1.msra.mxu0 %v916
  %1248 = vmatprep.subr.mxu0 0.0
  %1249 = vmatpush1.msra.mxu0 0.0
  %1250 = vmatprep.subr.mxu0 0.0
  %1251 = vmatpush1.msra.mxu0 0.0
  %1252 = vmatprep.subr.mxu0 0.0
  %1253 = vmatpush1.msra.mxu0 0.0
  %1254 = vmatprep.subr.mxu0 0.0
  %1255 = vmatpush1.msra.mxu0 0.0
  %1256 = vmatprep.subr.mxu0 0.0
  %1257 = vmatpush1.msra.mxu0 0.0
  %1258 = vmatprep.subr.mxu0 0.0
  %1259 = vmatpush1.msra.mxu0 0.0
  %1260 = vmatprep.subr.mxu0 0.0
  %1261 = vmatpush1.msra.mxu0 0.0
  %1262 = vmatprep.subr.mxu0 0.0
  %1263 = vmatpush1.msra.mxu0 0.0
  %1264 = vmatprep.subr.mxu0 0.0
  %1265 = vmatpush1.msra.mxu0 0.0
  %1266 = vmatprep.subr.mxu0 0.0
  %1267 = vmatpush1.msra.mxu0 0.0
  %1268 = vmatprep.subr.mxu0 0.0
  %1269 = vmatpush1.msra.mxu0 0.0
  %1270 = vmatprep.subr.mxu0 0.0
  %1271 = vmatpush1.msra.mxu0 0.0
  %1272 = vmatprep.subr.mxu0 0.0
  %1273 = vmatpush1.msra.mxu0 0.0
  %1274 = vmatprep.subr.mxu0 0.0
  %1275 = vmatpush1.msra.mxu0 0.0
  %1276 = vmatprep.subr.mxu0 0.0
  %1277 = vmatpush1.msra.mxu0 0.0
  %1278 = vmatprep.subr.mxu0 0.0
  %1279 = vmatpush1.msra.mxu0 0.0
  %1280 = vmatprep.subr.mxu0 0.0
  %1281 = vmatpush1.msra.mxu0 0.0
  %1282 = vmatprep.subr.mxu0 0.0
  %1283 = vmatpush1.msra.mxu0 0.0
  %1284 = vmatprep.subr.mxu0 0.0
  %1285 = vmatpush1.msra.mxu0 0.0
  %1286 = vmatprep.subr.mxu0 0.0
  %1287 = vmatpush1.msra.mxu0 0.0
  %1288 = vmatprep.subr.mxu0 0.0
  %1289 = vmatpush1.msra.mxu0 0.0
  %1290 = vmatprep.subr.mxu0 0.0
  %1291 = vmatpush1.msra.mxu0 0.0
  %1292 = vmatprep.subr.mxu0 0.0
  %1293 = vmatpush1.msra.mxu0 0.0
  %1294 = vmatprep.subr.mxu0 0.0
  %1295 = vmatpush1.msra.mxu0 0.0
  %1296 = vmatprep.subr.mxu0 0.0
  %1297 = vmatpush1.msra.mxu0 0.0
  %1298 = vmatprep.subr.mxu0 0.0
  %1299 = vmatpush1.msra.mxu0 0.0
  %1300 = vmatprep.subr.mxu0 0.0
  %1301 = vmatpush1.msra.mxu0 0.0
  %1302 = vmatprep.subr.mxu0 0.0
  %1303 = vmatpush1.msra.mxu0 0.0
  %1304 = vmatprep.mubr.f32.mxu0 0.0
  %1305 = vmatmul.mubr.f32.gmra.mrb[0].mxu0 %v1145
  %v1306 = vpop.f32.mrb[0].mxu0
  %v1307 = vadd.f32 %v987, %v1306
  %v1308 = vpop.f32.mrb[0].mxu0
  %v1309 = vadd.f32 %v987, %v1308
  %1310 = vmatprep.mubr.f32.mxu0 0.0
  %1311 = vmatmul.mubr.f32.gmra.mrb[0].mxu0 %v1148
  %v1312 = vpop.f32.mrb[0].mxu0
  %v1313 = vadd.f32 %v992, %v1312
  %v1314 = vpop.f32.mrb[0].mxu0
  %v1315 = vadd.f32 %v992, %v1314
  %1316 = vmatprep.mubr.f32.mxu0 0.0
  %1317 = vmatmul.mubr.f32.gmra.mrb[0].mxu0 %v1151
  %v1318 = vpop.f32.mrb[0].mxu0
  %v1319 = vadd.f32 %v997, %v1318
  %v1320 = vpop.f32.mrb[0].mxu0
  %v1321 = vadd.f32 %v997, %v1320
  %1322 = vmatprep.mubr.f32.mxu0 0.0
  %1323 = vmatmul.mubr.f32.gmra.mrb[0].mxu0 %v1154
  %v1324 = vpop.f32.mrb[0].mxu0
  %v1325 = vadd.f32 %v1002, %v1324
  %v1326 = vpop.f32.mrb[0].mxu0
  %v1327 = vadd.f32 %v1002, %v1326
  %1328 = vmatprep.mubr.f32.mxu0 0.0
  %1329 = vmatmul.mubr.f32.gmra.mrb[0].mxu0 %v1157
  %v1330 = vpop.f32.mrb[0].mxu0
  %v1331 = vadd.f32 %v1007, %v1330
  %v1332 = vpop.f32.mrb[0].mxu0
  %v1333 = vadd.f32 %v1007, %v1332
  %1334 = vmatprep.mubr.f32.mxu0 0.0
  %1335 = vmatmul.mubr.f32.gmra.mrb[0].mxu0 %v1160
  %v1336 = vpop.f32.mrb[0].mxu0
  %v1337 = vadd.f32 %v1012, %v1336
  %v1338 = vpop.f32.mrb[0].mxu0
  %v1339 = vadd.f32 %v1012, %v1338
  %1340 = vmatprep.mubr.f32.mxu0 0.0
  %1341 = vmatmul.mubr.f32.gmra.mrb[0].mxu0 %v1163
  %v1342 = vpop.f32.mrb[0].mxu0
  %v1343 = vadd.f32 %v1017, %v1342
  %v1344 = vpop.f32.mrb[0].mxu0
  %v1345 = vadd.f32 %v1017, %v1344
  %1346 = vmatprep.mubr.f32.mxu0 0.0
  %1347 = vmatmul.mubr.f32.gmra.mrb[0].mxu0 %v1166
  %v1348 = vpop.f32.mrb[0].mxu0
  %v1349 = vadd.f32 %v1022, %v1348
  %v1350 = vpop.f32.mrb[0].mxu0
  %v1351 = vadd.f32 %v1022, %v1350
  %1352 = vmatprep.mubr.f32.mxu0 0.0
  %1353 = vmatmul.mubr.f32.gmra.mrb[0].mxu0 %v1169
  %v1354 = vpop.f32.mrb[0].mxu0
  %v1355 = vadd.f32 %v1027, %v1354
  %v1356 = vpop.f32.mrb[0].mxu0
  %v1357 = vadd.f32 %v1027, %v1356
  %1358 = vmatprep.mubr.f32.mxu0 0.0
  %1359 = vmatmul.mubr.f32.gmra.mrb[0].mxu0 %v1172
  %v1360 = vpop.f32.mrb[0].mxu0
  %v1361 = vadd.f32 %v1032, %v1360
  %v1362 = vpop.f32.mrb[0].mxu0
  %v1363 = vadd.f32 %v1032, %v1362
  %1364 = vmatprep.mubr.f32.mxu0 0.0
  %1365 = vmatmul.mubr.f32.gmra.mrb[0].mxu0 %v1175
  %v1366 = vpop.f32.mrb[0].mxu0
  %v1367 = vadd.f32 %v1037, %v1366
  %v1368 = vpop.f32.mrb[0].mxu0
  %v1369 = vadd.f32 %v1037, %v1368
  %1370 = vmatprep.mubr.f32.mxu0 0.0
  %1371 = vmatmul.mubr.f32.gmra.mrb[0].mxu0 %v1178
  %v1372 = vpop.f32.mrb[0].mxu0
  %v1373 = vadd.f32 %v1042, %v1372
  %v1374 = vpop.f32.mrb[0].mxu0
  %v1375 = vadd.f32 %v1042, %v1374
  %1376 = vmatprep.mubr.f32.mxu0 0.0
  %1377 = vmatmul.mubr.f32.gmra.mrb[0].mxu0 %v1181
  %v1378 = vpop.f32.mrb[0].mxu0
  %v1379 = vadd.f32 %v1047, %v1378
  %v1380 = vpop.f32.mrb[0].mxu0
  %v1381 = vadd.f32 %v1047, %v1380
  %1382 = vmatprep.mubr.f32.mxu0 0.0
  %1383 = vmatmul.mubr.f32.gmra.mrb[0].mxu0 %v1184
  %v1384 = vpop.f32.mrb[0].mxu0
  %v1385 = vadd.f32 %v1052, %v1384
  %v1386 = vpop.f32.mrb[0].mxu0
  %v1387 = vadd.f32 %v1052, %v1386
  %1388 = vmatprep.mubr.f32.mxu0 0.0
  %1389 = vmatmul.mubr.f32.gmra.mrb[0].mxu0 %v1187
  %v1390 = vpop.f32.mrb[0].mxu0
  %v1391 = vadd.f32 %v1057, %v1390
  %v1392 = vpop.f32.mrb[0].mxu0
  %v1393 = vadd.f32 %v1057, %v1392
  %1394 = vmatprep.mubr.f32.mxu0 0.0
  %1395 = vmatmul.mubr.f32.gmra.mrb[0].mxu0 %v1190
  %v1396 = vpop.f32.mrb[0].mxu0
  %v1397 = vadd.f32 %v1062, %v1396
  %v1398 = vpop.f32.mrb[0].mxu0
  %v1399 = vadd.f32 %v1062, %v1398
  %1400 = vmatprep.mubr.f32.mxu0 0.0
  %1401 = vmatmul.mubr.f32.gmra.mrb[0].mxu0 %v1193
  %v1402 = vpop.f32.mrb[0].mxu0
  %v1403 = vadd.f32 %v1067, %v1402
  %v1404 = vpop.f32.mrb[0].mxu0
  %v1405 = vadd.f32 %v1067, %v1404
  %1406 = vmatprep.mubr.f32.mxu0 0.0
  %1407 = vmatmul.mubr.f32.gmra.mrb[0].mxu0 %v1196
  %v1408 = vpop.f32.mrb[0].mxu0
  %v1409 = vadd.f32 %v1072, %v1408
  %v1410 = vpop.f32.mrb[0].mxu0
  %v1411 = vadd.f32 %v1072, %v1410
  %1412 = vmatprep.mubr.f32.mxu0 0.0
  %1413 = vmatmul.mubr.f32.gmra.mrb[0].mxu0 %v1199
  %v1414 = vpop.f32.mrb[0].mxu0
  %v1415 = vadd.f32 %v1077, %v1414
  %v1416 = vpop.f32.mrb[0].mxu0
  %v1417 = vadd.f32 %v1077, %v1416
  %1418 = vmatprep.mubr.f32.mxu0 0.0
  %1419 = vmatmul.mubr.f32.gmra.mrb[0].mxu0 %v1202
  %v1420 = vpop.f32.mrb[0].mxu0
  %v1421 = vadd.f32 %v1082, %v1420
  %v1422 = vpop.f32.mrb[0].mxu0
  %v1423 = vadd.f32 %v1082, %v1422
  %1424 = vmatprep.mubr.f32.mxu0 0.0
  %1425 = vmatmul.mubr.f32.gmra.mrb[0].mxu0 %v1205
  %v1426 = vpop.f32.mrb[0].mxu0
  %v1427 = vadd.f32 %v1087, %v1426
  %v1428 = vpop.f32.mrb[0].mxu0
  %v1429 = vadd.f32 %v1087, %v1428
  %1430 = vmatprep.mubr.f32.mxu0 0.0
  %1431 = vmatmul.mubr.f32.gmra.mrb[0].mxu0 %v1208
  %v1432 = vpop.f32.mrb[0].mxu0
  %v1433 = vadd.f32 %v1092, %v1432
  %v1434 = vpop.f32.mrb[0].mxu0
  %v1435 = vadd.f32 %v1092, %v1434
  %1436 = vmatprep.mubr.f32.mxu0 0.0
  %1437 = vmatmul.mubr.f32.gmra.mrb[0].mxu0 %v1211
  %v1438 = vpop.f32.mrb[0].mxu0
  %v1439 = vadd.f32 %v1097, %v1438
  %v1440 = vpop.f32.mrb[0].mxu0
  %v1441 = vadd.f32 %v1097, %v1440
  %1442 = vmatprep.mubr.f32.mxu0 0.0
  %1443 = vmatmul.mubr.f32.gmra.mrb[0].mxu0 %v1214
  %v1444 = vpop.f32.mrb[0].mxu0
  %v1445 = vadd.f32 %v1102, %v1444
  %v1446 = vpop.f32.mrb[0].mxu0
  %v1447 = vadd.f32 %v1102, %v1446
  %1448 = vmatprep.mubr.f32.mxu0 0.0
  %1449 = vmatmul.mubr.f32.gmra.mrb[0].mxu0 %v1217
  %v1450 = vpop.f32.mrb[0].mxu0
  %v1451 = vadd.f32 %v1107, %v1450
  %v1452 = vpop.f32.mrb[0].mxu0
  %v1453 = vadd.f32 %v1107, %v1452
  %1454 = vmatprep.mubr.f32.mxu0 0.0
  %1455 = vmatmul.mubr.f32.gmra.mrb[0].mxu0 %v1220
  %v1456 = vpop.f32.mrb[0].mxu0
  %v1457 = vadd.f32 %v1112, %v1456
  %v1458 = vpop.f32.mrb[0].mxu0
  %v1459 = vadd.f32 %v1112, %v1458
  %1460 = vmatprep.mubr.f32.mxu0 0.0
  %1461 = vmatmul.mubr.f32.gmra.mrb[0].mxu0 %v1223
  %v1462 = vpop.f32.mrb[0].mxu0
  %v1463 = vadd.f32 %v1117, %v1462
  %v1464 = vpop.f32.mrb[0].mxu0
  %v1465 = vadd.f32 %v1117, %v1464
  %1466 = vmatprep.mubr.f32.mxu0 0.0
  %1467 = vmatmul.mubr.f32.gmra.mrb[0].mxu0 %v1226
  %v1468 = vpop.f32.mrb[0].mxu0
  %v1469 = vadd.f32 %v1122, %v1468
  %v1470 = vpop.f32.mrb[0].mxu0
  %v1471 = vadd.f32 %v1122, %v1470
  %1472 = vmatprep.mubr.f32.mxu0 0.0
  %1473 = vmatmul.mubr.f32.gmra.mrb[0].mxu0 %v1229
  %v1474 = vpop.f32.mrb[0].mxu0
  %v1475 = vadd.f32 %v1127, %v1474
  %v1476 = vpop.f32.mrb[0].mxu0
  %v1477 = vadd.f32 %v1127, %v1476
  %1478 = vmatprep.mubr.f32.mxu0 0.0
  %1479 = vmatmul.mubr.f32.gmra.mrb[0].mxu0 %v1232
  %v1480 = vpop.f32.mrb[0].mxu0
  %v1481 = vadd.f32 %v1132, %v1480
  %v1482 = vpop.f32.mrb[0].mxu0
  %v1483 = vadd.f32 %v1132, %v1482
  %1484 = vmatprep.mubr.f32.mxu0 0.0
  %1485 = vmatmul.mubr.f32.gmra.mrb[0].mxu0 %v1235
  %v1486 = vpop.f32.mrb[0].mxu0
  %v1487 = vadd.f32 %v1137, %v1486
  %v1488 = vpop.f32.mrb[0].mxu0
  %v1489 = vadd.f32 %v1137, %v1488
  %1490 = vmatprep.mubr.f32.mxu0 0.0
  %1491 = vmatmul.mubr.f32.gmra.mrb[0].mxu0 %v1238
  %v1492 = vpop.f32.mrb[0].mxu0
  %v1493 = vadd.f32 %v1142, %v1492
  %v1494 = vpop.f32.mrb[0].mxu0
  %v1495 = vadd.f32 %v1142, %v1494
  %1496 = vdwg.mxu0
  %1497 = vmatprep.subr.mxu0 %v907
  %1498 = vmatpush1.msra.mxu0 %v906
  %1499 = vmatprep.subr.mxu0 %v911
  %1500 = vmatpush1.msra.mxu0 %v910
  %1501 = vmatprep.subr.mxu0 %v915
  %1502 = vmatpush1.msra.mxu0 %v914
  %1503 = vmatprep.subr.mxu0 %v919
  %1504 = vmatpush1.msra.mxu0 %v918
  %1505 = vmatprep.subr.mxu0 0.0
  %1506 = vmatpush1.msra.mxu0 0.0
  %1507 = vmatprep.subr.mxu0 0.0
  %1508 = vmatpush1.msra.mxu0 0.0
  %1509 = vmatprep.subr.mxu0 0.0
  %1510 = vmatpush1.msra.mxu0 0.0
  %1511 = vmatprep.subr.mxu0 0.0
  %1512 = vmatpush1.msra.mxu0 0.0
  %1513 = vmatprep.subr.mxu0 0.0
  %1514 = vmatpush1.msra.mxu0 0.0
  %1515 = vmatprep.subr.mxu0 0.0
  %1516 = vmatpush1.msra.mxu0 0.0
  %1517 = vmatprep.subr.mxu0 0.0
  %1518 = vmatpush1.msra.mxu0 0.0
  %1519 = vmatprep.subr.mxu0 0.0
  %1520 = vmatpush1.msra.mxu0 0.0
  %1521 = vmatprep.subr.mxu0 0.0
  %1522 = vmatpush1.msra.mxu0 0.0
  %1523 = vmatprep.subr.mxu0 0.0
  %1524 = vmatpush1.msra.mxu0 0.0
  %1525 = vmatprep.subr.mxu0 0.0
  %1526 = vmatpush1.msra.mxu0 0.0
  %1527 = vmatprep.subr.mxu0 0.0
  %1528 = vmatpush1.msra.mxu0 0.0
  %1529 = vmatprep.subr.mxu0 0.0
  %1530 = vmatpush1.msra.mxu0 0.0
  %1531 = vmatprep.subr.mxu0 0.0
  %1532 = vmatpush1.msra.mxu0 0.0
  %1533 = vmatprep.subr.mxu0 0.0
  %1534 = vmatpush1.msra.mxu0 0.0
  %1535 = vmatprep.subr.mxu0 0.0
  %1536 = vmatpush1.msra.mxu0 0.0
  %1537 = vmatprep.subr.mxu0 0.0
  %1538 = vmatpush1.msra.mxu0 0.0
  %1539 = vmatprep.subr.mxu0 0.0
  %1540 = vmatpush1.msra.mxu0 0.0
  %1541 = vmatprep.subr.mxu0 0.0
  %1542 = vmatpush1.msra.mxu0 0.0
  %1543 = vmatprep.subr.mxu0 0.0
  %1544 = vmatpush1.msra.mxu0 0.0
  %1545 = vmatprep.subr.mxu0 0.0
  %1546 = vmatpush1.msra.mxu0 0.0
  %1547 = vmatprep.subr.mxu0 0.0
  %1548 = vmatpush1.msra.mxu0 0.0
  %1549 = vmatprep.subr.mxu0 0.0
  %1550 = vmatpush1.msra.mxu0 0.0
  %1551 = vmatprep.subr.mxu0 0.0
  %1552 = vmatpush1.msra.mxu0 0.0
  %1553 = vmatprep.subr.mxu0 0.0
  %1554 = vmatpush1.msra.mxu0 0.0
  %1555 = vmatprep.subr.mxu0 0.0
  %1556 = vmatpush1.msra.mxu0 0.0
  %1557 = vmatprep.subr.mxu0 0.0
  %1558 = vmatpush1.msra.mxu0 0.0
  %1559 = vmatprep.subr.mxu0 0.0
  %1560 = vmatpush1.msra.mxu0 0.0
  %1561 = vmatprep.mubr.f32.mxu0 0.0
  %1562 = vmatmul.mubr.f32.gmra.mrb[0].mxu0 %v1145
  %v1563 = vpop.f32.mrb[0].mxu0
  %v1564 = vadd.f32 %v987, %v1563
  %v1565 = vpop.f32.mrb[0].mxu0
  %v1566 = vadd.f32 %v987, %v1565
  %1567 = vmatprep.mubr.f32.mxu0 0.0
  %1568 = vmatmul.mubr.f32.gmra.mrb[0].mxu0 %v1148
  %v1569 = vpop.f32.mrb[0].mxu0
  %v1570 = vadd.f32 %v992, %v1569
  %v1571 = vpop.f32.mrb[0].mxu0
  %v1572 = vadd.f32 %v992, %v1571
  %1573 = vmatprep.mubr.f32.mxu0 0.0
  %1574 = vmatmul.mubr.f32.gmra.mrb[0].mxu0 %v1151
  %v1575 = vpop.f32.mrb[0].mxu0
  %v1576 = vadd.f32 %v997, %v1575
  %v1577 = vpop.f32.mrb[0].mxu0
  %v1578 = vadd.f32 %v997, %v1577
  %1579 = vmatprep.mubr.f32.mxu0 0.0
  %1580 = vmatmul.mubr.f32.gmra.mrb[0].mxu0 %v1154
  %v1581 = vpop.f32.mrb[0].mxu0
  %v1582 = vadd.f32 %v1002, %v1581
  %v1583 = vpop.f32.mrb[0].mxu0
  %v1584 = vadd.f32 %v1002, %v1583
  %1585 = vmatprep.mubr.f32.mxu0 0.0
  %1586 = vmatmul.mubr.f32.gmra.mrb[0].mxu0 %v1157
  %v1587 = vpop.f32.mrb[0].mxu0
  %v1588 = vadd.f32 %v1007, %v1587
  %v1589 = vpop.f32.mrb[0].mxu0
  %v1590 = vadd.f32 %v1007, %v1589
  %1591 = vmatprep.mubr.f32.mxu0 0.0
  %1592 = vmatmul.mubr.f32.gmra.mrb[0].mxu0 %v1160
  %v1593 = vpop.f32.mrb[0].mxu0
  %v1594 = vadd.f32 %v1012, %v1593
  %v1595 = vpop.f32.mrb[0].mxu0
  %v1596 = vadd.f32 %v1012, %v1595
  %1597 = vmatprep.mubr.f32.mxu0 0.0
  %1598 = vmatmul.mubr.f32.gmra.mrb[0].mxu0 %v1163
  %v1599 = vpop.f32.mrb[0].mxu0
  %v1600 = vadd.f32 %v1017, %v1599
  %v1601 = vpop.f32.mrb[0].mxu0
  %v1602 = vadd.f32 %v1017, %v1601
  %1603 = vmatprep.mubr.f32.mxu0 0.0
  %1604 = vmatmul.mubr.f32.gmra.mrb[0].mxu0 %v1166
  %v1605 = vpop.f32.mrb[0].mxu0
  %v1606 = vadd.f32 %v1022, %v1605
  %v1607 = vpop.f32.mrb[0].mxu0
  %v1608 = vadd.f32 %v1022, %v1607
  %1609 = vmatprep.mubr.f32.mxu0 0.0
  %1610 = vmatmul.mubr.f32.gmra.mrb[0].mxu0 %v1169
  %v1611 = vpop.f32.mrb[0].mxu0
  %v1612 = vadd.f32 %v1027, %v1611
  %v1613 = vpop.f32.mrb[0].mxu0
  %v1614 = vadd.f32 %v1027, %v1613
  %1615 = vmatprep.mubr.f32.mxu0 0.0
  %1616 = vmatmul.mubr.f32.gmra.mrb[0].mxu0 %v1172
  %v1617 = vpop.f32.mrb[0].mxu0
  %v1618 = vadd.f32 %v1032, %v1617
  %v1619 = vpop.f32.mrb[0].mxu0
  %v1620 = vadd.f32 %v1032, %v1619
  %1621 = vmatprep.mubr.f32.mxu0 0.0
  %1622 = vmatmul.mubr.f32.gmra.mrb[0].mxu0 %v1175
  %v1623 = vpop.f32.mrb[0].mxu0
  %v1624 = vadd.f32 %v1037, %v1623
  %v1625 = vpop.f32.mrb[0].mxu0
  %v1626 = vadd.f32 %v1037, %v1625
  %1627 = vmatprep.mubr.f32.mxu0 0.0
  %1628 = vmatmul.mubr.f32.gmra.mrb[0].mxu0 %v1178
  %v1629 = vpop.f32.mrb[0].mxu0
  %v1630 = vadd.f32 %v1042, %v1629
  %v1631 = vpop.f32.mrb[0].mxu0
  %v1632 = vadd.f32 %v1042, %v1631
  %1633 = vmatprep.mubr.f32.mxu0 0.0
  %1634 = vmatmul.mubr.f32.gmra.mrb[0].mxu0 %v1181
  %v1635 = vpop.f32.mrb[0].mxu0
  %v1636 = vadd.f32 %v1047, %v1635
  %v1637 = vpop.f32.mrb[0].mxu0
  %v1638 = vadd.f32 %v1047, %v1637
  %1639 = vmatprep.mubr.f32.mxu0 0.0
  %1640 = vmatmul.mubr.f32.gmra.mrb[0].mxu0 %v1184
  %v1641 = vpop.f32.mrb[0].mxu0
  %v1642 = vadd.f32 %v1052, %v1641
  %v1643 = vpop.f32.mrb[0].mxu0
  %v1644 = vadd.f32 %v1052, %v1643
  %1645 = vmatprep.mubr.f32.mxu0 0.0
  %1646 = vmatmul.mubr.f32.gmra.mrb[0].mxu0 %v1187
  %v1647 = vpop.f32.mrb[0].mxu0
  %v1648 = vadd.f32 %v1057, %v1647
  %v1649 = vpop.f32.mrb[0].mxu0
  %v1650 = vadd.f32 %v1057, %v1649
  %1651 = vmatprep.mubr.f32.mxu0 0.0
  %1652 = vmatmul.mubr.f32.gmra.mrb[0].mxu0 %v1190
  %v1653 = vpop.f32.mrb[0].mxu0
  %v1654 = vadd.f32 %v1062, %v1653
  %v1655 = vpop.f32.mrb[0].mxu0
  %v1656 = vadd.f32 %v1062, %v1655
  %1657 = vmatprep.mubr.f32.mxu0 0.0
  %1658 = vmatmul.mubr.f32.gmra.mrb[0].mxu0 %v1193
  %v1659 = vpop.f32.mrb[0].mxu0
  %v1660 = vadd.f32 %v1067, %v1659
  %v1661 = vpop.f32.mrb[0].mxu0
  %v1662 = vadd.f32 %v1067, %v1661
  %1663 = vmatprep.mubr.f32.mxu0 0.0
  %1664 = vmatmul.mubr.f32.gmra.mrb[0].mxu0 %v1196
  %v1665 = vpop.f32.mrb[0].mxu0
  %v1666 = vadd.f32 %v1072, %v1665
  %v1667 = vpop.f32.mrb[0].mxu0
  %v1668 = vadd.f32 %v1072, %v1667
  %1669 = vmatprep.mubr.f32.mxu0 0.0
  %1670 = vmatmul.mubr.f32.gmra.mrb[0].mxu0 %v1199
  %v1671 = vpop.f32.mrb[0].mxu0
  %v1672 = vadd.f32 %v1077, %v1671
  %v1673 = vpop.f32.mrb[0].mxu0
  %v1674 = vadd.f32 %v1077, %v1673
  %1675 = vmatprep.mubr.f32.mxu0 0.0
  %1676 = vmatmul.mubr.f32.gmra.mrb[0].mxu0 %v1202
  %v1677 = vpop.f32.mrb[0].mxu0
  %v1678 = vadd.f32 %v1082, %v1677
  %v1679 = vpop.f32.mrb[0].mxu0
  %v1680 = vadd.f32 %v1082, %v1679
  %1681 = vmatprep.mubr.f32.mxu0 0.0
  %1682 = vmatmul.mubr.f32.gmra.mrb[0].mxu0 %v1205
  %v1683 = vpop.f32.mrb[0].mxu0
  %v1684 = vadd.f32 %v1087, %v1683
  %v1685 = vpop.f32.mrb[0].mxu0
  %v1686 = vadd.f32 %v1087, %v1685
  %1687 = vmatprep.mubr.f32.mxu0 0.0
  %1688 = vmatmul.mubr.f32.gmra.mrb[0].mxu0 %v1208
  %v1689 = vpop.f32.mrb[0].mxu0
  %v1690 = vadd.f32 %v1092, %v1689
  %v1691 = vpop.f32.mrb[0].mxu0
  %v1692 = vadd.f32 %v1092, %v1691
  %1693 = vmatprep.mubr.f32.mxu0 0.0
  %1694 = vmatmul.mubr.f32.gmra.mrb[0].mxu0 %v1211
  %v1695 = vpop.f32.mrb[0].mxu0
  %v1696 = vadd.f32 %v1097, %v1695
  %v1697 = vpop.f32.mrb[0].mxu0
  %v1698 = vadd.f32 %v1097, %v1697
  %1699 = vmatprep.mubr.f32.mxu0 0.0
  %1700 = vmatmul.mubr.f32.gmra.mrb[0].mxu0 %v1214
  %v1701 = vpop.f32.mrb[0].mxu0
  %v1702 = vadd.f32 %v1102, %v1701
  %v1703 = vpop.f32.mrb[0].mxu0
  %v1704 = vadd.f32 %v1102, %v1703
  %1705 = vmatprep.mubr.f32.mxu0 0.0
  %1706 = vmatmul.mubr.f32.gmra.mrb[0].mxu0 %v1217
  %v1707 = vpop.f32.mrb[0].mxu0
  %v1708 = vadd.f32 %v1107, %v1707
  %v1709 = vpop.f32.mrb[0].mxu0
  %v1710 = vadd.f32 %v1107, %v1709
  %1711 = vmatprep.mubr.f32.mxu0 0.0
  %1712 = vmatmul.mubr.f32.gmra.mrb[0].mxu0 %v1220
  %v1713 = vpop.f32.mrb[0].mxu0
  %v1714 = vadd.f32 %v1112, %v1713
  %v1715 = vpop.f32.mrb[0].mxu0
  %v1716 = vadd.f32 %v1112, %v1715
  %1717 = vmatprep.mubr.f32.mxu0 0.0
  %1718 = vmatmul.mubr.f32.gmra.mrb[0].mxu0 %v1223
  %v1719 = vpop.f32.mrb[0].mxu0
  %v1720 = vadd.f32 %v1117, %v1719
  %v1721 = vpop.f32.mrb[0].mxu0
  %v1722 = vadd.f32 %v1117, %v1721
  %1723 = vmatprep.mubr.f32.mxu0 0.0
  %1724 = vmatmul.mubr.f32.gmra.mrb[0].mxu0 %v1226
  %v1725 = vpop.f32.mrb[0].mxu0
  %v1726 = vadd.f32 %v1122, %v1725
  %v1727 = vpop.f32.mrb[0].mxu0
  %v1728 = vadd.f32 %v1122, %v1727
  %1729 = vmatprep.mubr.f32.mxu0 0.0
  %1730 = vmatmul.mubr.f32.gmra.mrb[0].mxu0 %v1229
  %v1731 = vpop.f32.mrb[0].mxu0
  %v1732 = vadd.f32 %v1127, %v1731
  %v1733 = vpop.f32.mrb[0].mxu0
  %v1734 = vadd.f32 %v1127, %v1733
  %1735 = vmatprep.mubr.f32.mxu0 0.0
  %1736 = vmatmul.mubr.f32.gmra.mrb[0].mxu0 %v1232
  %v1737 = vpop.f32.mrb[0].mxu0
  %v1738 = vadd.f32 %v1132, %v1737
  %v1739 = vpop.f32.mrb[0].mxu0
  %v1740 = vadd.f32 %v1132, %v1739
  %1741 = vmatprep.mubr.f32.mxu0 0.0
  %1742 = vmatmul.mubr.f32.gmra.mrb[0].mxu0 %v1235
  %v1743 = vpop.f32.mrb[0].mxu0
  %v1744 = vadd.f32 %v1137, %v1743
  %v1745 = vpop.f32.mrb[0].mxu0
  %v1746 = vadd.f32 %v1137, %v1745
  %1747 = vmatprep.mubr.f32.mxu0 0.0
  %1748 = vmatmul.mubr.f32.gmra.mrb[0].mxu0 %v1238
  %v1749 = vpop.f32.mrb[0].mxu0
  %v1750 = vadd.f32 %v1142, %v1749
  %v1751 = vpop.f32.mrb[0].mxu0
  %v1752 = vadd.f32 %v1142, %v1751
  %1753 = vdwg.mxu0
  %v1754 = vmax.f32 %v1307, 0.0
  %v1755 = vmax.f32 %v1309, 0.0
  %v1756 = vmax.f32 %v1564, 0.0
  %v1757 = vmax.f32 %v1566, 0.0
  %v1758 = vmax.f32 %v1313, 0.0
  %v1759 = vmax.f32 %v1315, 0.0
  %v1760 = vmax.f32 %v1570, 0.0
  %v1761 = vmax.f32 %v1572, 0.0
  %v1762 = vmax.f32 %v1319, 0.0
  %v1763 = vmax.f32 %v1321, 0.0
  %v1764 = vmax.f32 %v1576, 0.0
  %v1765 = vmax.f32 %v1578, 0.0
  %v1766 = vmax.f32 %v1325, 0.0
  %v1767 = vmax.f32 %v1327, 0.0
  %v1768 = vmax.f32 %v1582, 0.0
  %v1769 = vmax.f32 %v1584, 0.0
  %v1770 = vmax.f32 %v1331, 0.0
  %v1771 = vmax.f32 %v1333, 0.0
  %v1772 = vmax.f32 %v1588, 0.0
  %v1773 = vmax.f32 %v1590, 0.0
  %v1774 = vmax.f32 %v1337, 0.0
  %v1775 = vmax.f32 %v1339, 0.0
  %v1776 = vmax.f32 %v1594, 0.0
  %v1777 = vmax.f32 %v1596, 0.0
  %v1778 = vmax.f32 %v1343, 0.0
  %v1779 = vmax.f32 %v1345, 0.0
  %v1780 = vmax.f32 %v1600, 0.0
  %v1781 = vmax.f32 %v1602, 0.0
  %v1782 = vmax.f32 %v1349, 0.0
  %v1783 = vmax.f32 %v1351, 0.0
  %v1784 = vmax.f32 %v1606, 0.0
  %v1785 = vmax.f32 %v1608, 0.0
  %v1786 = vmax.f32 %v1355, 0.0
  %v1787 = vmax.f32 %v1357, 0.0
  %v1788 = vmax.f32 %v1612, 0.0
  %v1789 = vmax.f32 %v1614, 0.0
  %v1790 = vmax.f32 %v1361, 0.0
  %v1791 = vmax.f32 %v1363, 0.0
  %v1792 = vmax.f32 %v1618, 0.0
  %v1793 = vmax.f32 %v1620, 0.0
  %v1794 = vmax.f32 %v1367, 0.0
  %v1795 = vmax.f32 %v1369, 0.0
  %v1796 = vmax.f32 %v1624, 0.0
  %v1797 = vmax.f32 %v1626, 0.0
  %v1798 = vmax.f32 %v1373, 0.0
  %v1799 = vmax.f32 %v1375, 0.0
  %v1800 = vmax.f32 %v1630, 0.0
  %v1801 = vmax.f32 %v1632, 0.0
  %v1802 = vmax.f32 %v1379, 0.0
  %v1803 = vmax.f32 %v1381, 0.0
  %v1804 = vmax.f32 %v1636, 0.0
  %v1805 = vmax.f32 %v1638, 0.0
  %v1806 = vmax.f32 %v1385, 0.0
  %v1807 = vmax.f32 %v1387, 0.0
  %v1808 = vmax.f32 %v1642, 0.0
  %v1809 = vmax.f32 %v1644, 0.0
  %v1810 = vmax.f32 %v1391, 0.0
  %v1811 = vmax.f32 %v1393, 0.0
  %v1812 = vmax.f32 %v1648, 0.0
  %v1813 = vmax.f32 %v1650, 0.0
  %v1814 = vmax.f32 %v1397, 0.0
  %v1815 = vmax.f32 %v1399, 0.0
  %v1816 = vmax.f32 %v1654, 0.0
  %v1817 = vmax.f32 %v1656, 0.0
  %v1818 = vmax.f32 %v1403, 0.0
  %v1819 = vmax.f32 %v1405, 0.0
  %v1820 = vmax.f32 %v1660, 0.0
  %v1821 = vmax.f32 %v1662, 0.0
  %v1822 = vmax.f32 %v1409, 0.0
  %v1823 = vmax.f32 %v1411, 0.0
  %v1824 = vmax.f32 %v1666, 0.0
  %v1825 = vmax.f32 %v1668, 0.0
  %v1826 = vmax.f32 %v1415, 0.0
  %v1827 = vmax.f32 %v1417, 0.0
  %v1828 = vmax.f32 %v1672, 0.0
  %v1829 = vmax.f32 %v1674, 0.0
  %v1830 = vmax.f32 %v1421, 0.0
  %v1831 = vmax.f32 %v1423, 0.0
  %v1832 = vmax.f32 %v1678, 0.0
  %v1833 = vmax.f32 %v1680, 0.0
  %v1834 = vmax.f32 %v1427, 0.0
  %v1835 = vmax.f32 %v1429, 0.0
  %v1836 = vmax.f32 %v1684, 0.0
  %v1837 = vmax.f32 %v1686, 0.0
  %v1838 = vmax.f32 %v1433, 0.0
  %v1839 = vmax.f32 %v1435, 0.0
  %v1840 = vmax.f32 %v1690, 0.0
  %v1841 = vmax.f32 %v1692, 0.0
  %v1842 = vmax.f32 %v1439, 0.0
  %v1843 = vmax.f32 %v1441, 0.0
  %v1844 = vmax.f32 %v1696, 0.0
  %v1845 = vmax.f32 %v1698, 0.0
  %v1846 = vmax.f32 %v1445, 0.0
  %v1847 = vmax.f32 %v1447, 0.0
  %v1848 = vmax.f32 %v1702, 0.0
  %v1849 = vmax.f32 %v1704, 0.0
  %v1850 = vmax.f32 %v1451, 0.0
  %v1851 = vmax.f32 %v1453, 0.0
  %v1852 = vmax.f32 %v1708, 0.0
  %v1853 = vmax.f32 %v1710, 0.0
  %v1854 = vmax.f32 %v1457, 0.0
  %v1855 = vmax.f32 %v1459, 0.0
  %v1856 = vmax.f32 %v1714, 0.0
  %v1857 = vmax.f32 %v1716, 0.0
  %v1858 = vmax.f32 %v1463, 0.0
  %v1859 = vmax.f32 %v1465, 0.0
  %v1860 = vmax.f32 %v1720, 0.0
  %v1861 = vmax.f32 %v1722, 0.0
  %v1862 = vmax.f32 %v1469, 0.0
  %v1863 = vmax.f32 %v1471, 0.0
  %v1864 = vmax.f32 %v1726, 0.0
  %v1865 = vmax.f32 %v1728, 0.0
  %v1866 = vmax.f32 %v1475, 0.0
  %v1867 = vmax.f32 %v1477, 0.0
  %v1868 = vmax.f32 %v1732, 0.0
  %v1869 = vmax.f32 %v1734, 0.0
  %v1870 = vmax.f32 %v1481, 0.0
  %v1871 = vmax.f32 %v1483, 0.0
  %v1872 = vmax.f32 %v1738, 0.0
  %v1873 = vmax.f32 %v1740, 0.0
  %v1874 = vmax.f32 %v1487, 0.0
  %v1875 = vmax.f32 %v1489, 0.0
  %v1876 = vmax.f32 %v1744, 0.0
  %v1877 = vmax.f32 %v1746, 0.0
  %v1878 = vmax.f32 %v1493, 0.0
  %v1879 = vmax.f32 %v1495, 0.0
  %v1880 = vmax.f32 %v1750, 0.0
  %v1881 = vmax.f32 %v1752, 0.0
  %v1882 = vld [vmem:[%s1 + $0x290] sm:$0xff]
  %v1883 = vld [vmem:[%s1 + $0x298] sm:$0xff]
  %v1884 = vld [vmem:[%s1 + $0x630] sm:$0xff]
  %1886 = vset.pattern.permute.xlu0 0
  %1887 = vperm.xlu0 %1886, %v1884
  %v1888 = vpop.permute.xlu0 %1887
  %1890 = vmatprep.subr.mxu0 %v1755
  %1891 = vmatpush1.msra.mxu0 %v1754
  %1892 = vmatprep.subr.mxu0 %v1759
  %1893 = vmatpush1.msra.mxu0 %v1758
  %1894 = vmatprep.subr.mxu0 %v1763
  %1895 = vmatpush1.msra.mxu0 %v1762
  %1896 = vmatprep.subr.mxu0 %v1767
  %1897 = vmatpush1.msra.mxu0 %v1766
  %1898 = vmatprep.subr.mxu0 %v1771
  %1899 = vmatpush1.msra.mxu0 %v1770
  %1900 = vmatprep.subr.mxu0 %v1775
  %1901 = vmatpush1.msra.mxu0 %v1774
  %1902 = vmatprep.subr.mxu0 %v1779
  %1903 = vmatpush1.msra.mxu0 %v1778
  %1904 = vmatprep.subr.mxu0 %v1783
  %1905 = vmatpush1.msra.mxu0 %v1782
  %1906 = vmatprep.subr.mxu0 %v1787
  %1907 = vmatpush1.msra.mxu0 %v1786
  %1908 = vmatprep.subr.mxu0 %v1791
  %1909 = vmatpush1.msra.mxu0 %v1790
  %1910 = vmatprep.subr.mxu0 %v1795
  %1911 = vmatpush1.msra.mxu0 %v1794
  %1912 = vmatprep.subr.mxu0 %v1799
  %1913 = vmatpush1.msra.mxu0 %v1798
  %1914 = vmatprep.subr.mxu0 %v1803
  %1915 = vmatpush1.msra.mxu0 %v1802
  %1916 = vmatprep.subr.mxu0 %v1807
  %1917 = vmatpush1.msra.mxu0 %v1806
  %1918 = vmatprep.subr.mxu0 %v1811
  %1919 = vmatpush1.msra.mxu0 %v1810
  %1920 = vmatprep.subr.mxu0 %v1815
  %1921 = vmatpush1.msra.mxu0 %v1814
  %1922 = vmatprep.subr.mxu0 %v1819
  %1923 = vmatpush1.msra.mxu0 %v1818
  %1924 = vmatprep.subr.mxu0 %v1823
  %1925 = vmatpush1.msra.mxu0 %v1822
  %1926 = vmatprep.subr.mxu0 %v1827
  %1927 = vmatpush1.msra.mxu0 %v1826
  %1928 = vmatprep.subr.mxu0 %v1831
  %1929 = vmatpush1.msra.mxu0 %v1830
  %1930 = vmatprep.subr.mxu0 %v1835
  %1931 = vmatpush1.msra.mxu0 %v1834
  %1932 = vmatprep.subr.mxu0 %v1839
  %1933 = vmatpush1.msra.mxu0 %v1838
  %1934 = vmatprep.subr.mxu0 %v1843
  %1935 = vmatpush1.msra.mxu0 %v1842
  %1936 = vmatprep.subr.mxu0 %v1847
  %1937 = vmatpush1.msra.mxu0 %v1846
  %1938 = vmatprep.subr.mxu0 %v1851
  %1939 = vmatpush1.msra.mxu0 %v1850
  %1940 = vmatprep.subr.mxu0 %v1855
  %1941 = vmatpush1.msra.mxu0 %v1854
  %1942 = vmatprep.subr.mxu0 %v1859
  %1943 = vmatpush1.msra.mxu0 %v1858
  %1944 = vmatprep.subr.mxu0 %v1863
  %1945 = vmatpush1.msra.mxu0 %v1862
  %1946 = vmatprep.subr.mxu0 %v1867
  %1947 = vmatpush1.msra.mxu0 %v1866
  %1948 = vmatprep.subr.mxu0 %v1871
  %1949 = vmatpush1.msra.mxu0 %v1870
  %1950 = vmatprep.subr.mxu0 %v1875
  %1951 = vmatpush1.msra.mxu0 %v1874
  %1952 = vmatprep.subr.mxu0 %v1879
  %1953 = vmatpush1.msra.mxu0 %v1878
  %1954 = vmatprep.mubr.f32.mxu0 %v1883
  %1955 = vmatmul.mubr.f32.gmra.mrb[0].mxu0 %v1882
  %v1956 = vpop.f32.mrb[0].mxu0
  %v1957 = vadd.f32 %v1888, %v1956
  %v1958 = vpop.f32.mrb[0].mxu0
  %v1959 = vadd.f32 %v1888, %v1958
  %1960 = vdwg.mxu0
  %1961 = vmatprep.subr.mxu0 %v1757
  %1962 = vmatpush1.msra.mxu0 %v1756
  %1963 = vmatprep.subr.mxu0 %v1761
  %1964 = vmatpush1.msra.mxu0 %v1760
  %1965 = vmatprep.subr.mxu0 %v1765
  %1966 = vmatpush1.msra.mxu0 %v1764
  %1967 = vmatprep.subr.mxu0 %v1769
  %1968 = vmatpush1.msra.mxu0 %v1768
  %1969 = vmatprep.subr.mxu0 %v1773
  %1970 = vmatpush1.msra.mxu0 %v1772
  %1971 = vmatprep.subr.mxu0 %v1777
  %1972 = vmatpush1.msra.mxu0 %v1776
  %1973 = vmatprep.subr.mxu0 %v1781
  %1974 = vmatpush1.msra.mxu0 %v1780
  %1975 = vmatprep.subr.mxu0 %v1785
  %1976 = vmatpush1.msra.mxu0 %v1784
  %1977 = vmatprep.subr.mxu0 %v1789
  %1978 = vmatpush1.msra.mxu0 %v1788
  %1979 = vmatprep.subr.mxu0 %v1793
  %1980 = vmatpush1.msra.mxu0 %v1792
  %1981 = vmatprep.subr.mxu0 %v1797
  %1982 = vmatpush1.msra.mxu0 %v1796
  %1983 = vmatprep.subr.mxu0 %v1801
  %1984 = vmatpush1.msra.mxu0 %v1800
  %1985 = vmatprep.subr.mxu0 %v1805
  %1986 = vmatpush1.msra.mxu0 %v1804
  %1987 = vmatprep.subr.mxu0 %v1809
  %1988 = vmatpush1.msra.mxu0 %v1808
  %1989 = vmatprep.subr.mxu0 %v1813
  %1990 = vmatpush1.msra.mxu0 %v1812
  %1991 = vmatprep.subr.mxu0 %v1817
  %1992 = vmatpush1.msra.mxu0 %v1816
  %1993 = vmatprep.subr.mxu0 %v1821
  %1994 = vmatpush1.msra.mxu0 %v1820
  %1995 = vmatprep.subr.mxu0 %v1825
  %1996 = vmatpush1.msra.mxu0 %v1824
  %1997 = vmatprep.subr.mxu0 %v1829
  %1998 = vmatpush1.msra.mxu0 %v1828
  %1999 = vmatprep.subr.mxu0 %v1833
  %2000 = vmatpush1.msra.mxu0 %v1832
  %2001 = vmatprep.subr.mxu0 %v1837
  %2002 = vmatpush1.msra.mxu0 %v1836
  %2003 = vmatprep.subr.mxu0 %v1841
  %2004 = vmatpush1.msra.mxu0 %v1840
  %2005 = vmatprep.subr.mxu0 %v1845
  %2006 = vmatpush1.msra.mxu0 %v1844
  %2007 = vmatprep.subr.mxu0 %v1849
  %2008 = vmatpush1.msra.mxu0 %v1848
  %2009 = vmatprep.subr.mxu0 %v1853
  %2010 = vmatpush1.msra.mxu0 %v1852
  %2011 = vmatprep.subr.mxu0 %v1857
  %2012 = vmatpush1.msra.mxu0 %v1856
  %2013 = vmatprep.subr.mxu0 %v1861
  %2014 = vmatpush1.msra.mxu0 %v1860
  %2015 = vmatprep.subr.mxu0 %v1865
  %2016 = vmatpush1.msra.mxu0 %v1864
  %2017 = vmatprep.subr.mxu0 %v1869
  %2018 = vmatpush1.msra.mxu0 %v1868
  %2019 = vmatprep.subr.mxu0 %v1873
  %2020 = vmatpush1.msra.mxu0 %v1872
  %2021 = vmatprep.subr.mxu0 %v1877
  %2022 = vmatpush1.msra.mxu0 %v1876
  %2023 = vmatprep.subr.mxu0 %v1881
  %2024 = vmatpush1.msra.mxu0 %v1880
  %2025 = vmatprep.mubr.f32.mxu0 %v1883
  %2026 = vmatmul.mubr.f32.gmra.mrb[0].mxu0 %v1882
  %v2027 = vpop.f32.mrb[0].mxu0
  %v2028 = vadd.f32 %v1888, %v2027
  %v2029 = vpop.f32.mrb[0].mxu0
  %v2030 = vadd.f32 %v1888, %v2029
  %2031 = vdwg.mxu0
  %v2032 = vxor.u32 %v1957, 2147483648
  %v2033 = vxor.u32 %v1959, 2147483648
  %v2034 = vxor.u32 %v2028, 2147483648
  %v2035 = vxor.u32 %v2030, 2147483648
  %v2036 = vmul.f32 %v2032, 1.442695
  %v2037 = vpow.pop %v2036
  %v2038 = vmul.f32 %v2033, 1.442695
  %v2039 = vpow.pop %v2038
  %v2040 = vmul.f32 %v2034, 1.442695
  %v2041 = vpow.pop %v2040
  %v2042 = vmul.f32 %v2035, 1.442695
  %v2043 = vpow.pop %v2042
  %v2044 = vadd.f32 %v2037, 1.0
  %v2045 = vadd.f32 %v2039, 1.0
  %v2046 = vadd.f32 %v2041, 1.0
  %v2047 = vadd.f32 %v2043, 1.0
  %v2048 = vrcp.pop %v2044
  %v2049 = vmul.f32 1.0, %v2048
  %v2050 = vrcp.pop %v2045
  %v2051 = vmul.f32 1.0, %v2050
  %v2052 = vrcp.pop %v2046
  %v2053 = vmul.f32 1.0, %v2052
  %v2054 = vrcp.pop %v2047
  %v2055 = vmul.f32 1.0, %v2054
  %2056 = vst [vmem:[%s2] sm:$0xff] %v2049
  %2057 = vst [vmem:[%s2 + $0x8] sm:$0xff] %v2051
  %2058 = vst [vmem:[%s2 + $0x10] sm:$0xff] %v2053
  %2059 = vst [vmem:[%s2 + $0x18] sm:$0xff] %v2055
  %2060 = vst [vmem:[%s2 + $0x20] sm:$0xff] %v669
  %2061 = vst [vmem:[%s2 + $0x28] sm:$0xff] %v670
  %2062 = vst [vmem:[%s2 + $0x30] sm:$0xff] %v671
  %2063 = vst [vmem:[%s2 + $0x38] sm:$0xff] %v672
  %2064 = vst [vmem:[%s2 + $0x40] sm:$0xff] %v673
  %2065 = vst [vmem:[%s2 + $0x48] sm:$0xff] %v674
  %2066 = vst [vmem:[%s2 + $0x50] sm:$0xff] %v675
  %2067 = vst [vmem:[%s2 + $0x58] sm:$0xff] %v676
  %2068 = vst [vmem:[%s2 + $0x60] sm:$0xff] %v677
  %2069 = vst [vmem:[%s2 + $0x68] sm:$0xff] %v678
  %2070 = vst [vmem:[%s2 + $0x70] sm:$0xff] %v679
  %2071 = vst [vmem:[%s2 + $0x78] sm:$0xff] %v680
  %2072 = vst [vmem:[%s2 + $0x80] sm:$0xff] %v681
  %2073 = vst [vmem:[%s2 + $0x88] sm:$0xff] %v682
  %2074 = vst [vmem:[%s2 + $0x90] sm:$0xff] %v683
  %2075 = vst [vmem:[%s2 + $0x98] sm:$0xff] %v684
  %2076 = vst [vmem:[%s2 + $0xa0] sm:$0xff] %v904
  %2077 = vst [vmem:[%s2 + $0xa8] sm:$0xff] %v905
  %2078 = vst [vmem:[%s2 + $0xb0] sm:$0xff] %v906
  %2079 = vst [vmem:[%s2 + $0xb8] sm:$0xff] %v907
  %2080 = vst [vmem:[%s2 + $0xc0] sm:$0xff] %v908
  %2081 = vst [vmem:[%s2 + $0xc8] sm:$0xff] %v909
  %2082 = vst [vmem:[%s2 + $0xd0] sm:$0xff] %v910
  %2083 = vst [vmem:[%s2 + $0xd8] sm:$0xff] %v911
  %2084 = vst [vmem:[%s2 + $0xe0] sm:$0xff] %v912
  %2085 = vst [vmem:[%s2 + $0xe8] sm:$0xff] %v913
  %2086 = vst [vmem:[%s2 + $0xf0] sm:$0xff] %v914
  %2087 = vst [vmem:[%s2 + $0xf8] sm:$0xff] %v915
  %2088 = vst [vmem:[%s2 + $0x100] sm:$0xff] %v916
  %2089 = vst [vmem:[%s2 + $0x108] sm:$0xff] %v917
  %2090 = vst [vmem:[%s2 + $0x110] sm:$0xff] %v918
  %2091 = vst [vmem:[%s2 + $0x118] sm:$0xff] %v919
  %2092 = vst [vmem:[%s2 + $0x120] sm:$0xff] %v439
  %2093 = vst [vmem:[%s2 + $0x128] sm:$0xff] %v441
  %2094 = vst [vmem:[%s2 + $0x130] sm:$0xff] %v443
  %2095 = vst [vmem:[%s2 + $0x138] sm:$0xff] %v445
  // Predicated region
  $region10: #{afterimage_forward.1} parent=0 // pred_check
    _
  $region11: #{afterimage_forward.1} parent=0 // pred_check_branch
    %2097 = sbr.rel (0) target = $region13
  $region12: #{afterimage_forward.1} parent=0 // pred_region
    _
  $region13: #{afterimage_forward.1} parent=0 // pred_fallthru
    _
  // Predicated region
  $region14: #{afterimage_forward.1} parent=0 // pred_check
    _
  $region15: #{afterimage_forward.1} parent=0 // pred_check_branch
    %2099 = sbr.rel (0) target = $region17
  $region16: #{afterimage_forward.1} parent=0 // pred_region
    _
  $region17: #{afterimage_forward.1} parent=0 // pred_fallthru
    _

</llo_original>
